<compile_context>
chip_gen: v7x
topology: tpu7x:2x2x1
jax: 0.10.0
libtpu: 0.0.40
codegen_flags: <defaults>
</compile_context>

<pallas_src>
import jax
import jax.numpy as jnp
from jax.experimental import pallas as pl
from jax.experimental.pallas import tpu as pltpu

BN_EPS = 1e-5
VMEM_LIMIT = 32 * 1024 * 1024  # safe on v5e/v6e/v7x at these block sizes


# ----------------------------------------------------------------------------
# Fully fused kernel: reduce(2x2/s2) -> main(3x3/p1) -> increase(1x1)
#                     + maxpool(2,2)+indices + channel-pad + add + final PReLU
# ----------------------------------------------------------------------------
def _make_fused_kernel(W_in, Cin, mid, Cout, Ho, Wo):
    def kernel(x_ref, w1_ref, b1_ref, a1_ref, w3_ref, b3_ref, a3_ref,
               wi_ref, bi_ref, ai_ref, af_ref, out_ref, idx_ref, xp_ref):
        # x block layout (1, Ho, 2, Wo, 2*Cin): row_even = input rows 2*oh,
        # row_odd = input rows 2*oh+1, with the two W-adjacent pixels of each
        # 2x2 window packed along the lane dim.
        row_even = x_ref[0, :, 0, :, :]                     # (Ho, Wo, 2*Cin) f32
        row_odd = x_ref[0, :, 1, :, :]                      # (Ho, Wo, 2*Cin) f32

        # ---- stage 1: 2x2/s2 reduce conv == one K=4*Cin matmul + bias + PReLU
        p = jnp.concatenate([row_even, row_odd], axis=-1)   # (Ho, Wo, 4*Cin)
        p = p.reshape(Ho * Wo, 4 * Cin).astype(jnp.bfloat16)
        y1 = jnp.dot(p, w1_ref[...], preferred_element_type=jnp.float32)
        y1 = y1 + b1_ref[...]
        y1 = jnp.where(y1 >= 0.0, y1, a1_ref[...] * y1)     # (Ho*Wo, mid) f32

        # ---- stage 2: 3x3/p1 main conv — VMEM halo scratch + one K=9*mid dot
        xp_ref[...] = jnp.zeros_like(xp_ref)                # zero halo border
        xp_ref[1:Ho + 1, 1:Wo + 1, :] = (
            y1.reshape(Ho, Wo, mid).astype(jnp.bfloat16))
        cols = [xp_ref[dh:dh + Ho, dw:dw + Wo, :].reshape(Ho * Wo, mid)
                for dh in range(3) for dw in range(3)]
        col = jnp.concatenate(cols, axis=-1)                # (Ho*Wo, 9*mid) bf16
        y3 = jnp.dot(col, w3_ref[...], preferred_element_type=jnp.float32)
        y3 = y3 + b3_ref[...]
        y3 = jnp.where(y3 >= 0.0, y3, a3_ref[...] * y3)     # (Ho*Wo, mid) f32

        # ---- stage 3: 1x1 increase-channels conv + bias + PReLU -------------
        z = jnp.dot(y3.astype(jnp.bfloat16), wi_ref[...],
                    preferred_element_type=jnp.float32)
        z = z + bi_ref[...]
        z = jnp.where(z >= 0.0, z, ai_ref[...] * z)         # (Ho*Wo, Cout) f32
        conv = z.reshape(Ho, Wo, Cout)
        # TODO(synk): nn.Dropout2d(p) is identity in eval mode; training-mode
        #             channel dropout + 1/(1-p) rescale is not implemented.

        # ---- shortcut: maxpool(2,2) value + flat H*W index ------------------
        v00 = row_even[:, :, :Cin]
        v01 = row_even[:, :, Cin:]
        v10 = row_odd[:, :, :Cin]
        v11 = row_odd[:, :, Cin:]
        oh = jax.lax.broadcasted_iota(jnp.int32, (Ho, Wo, 1), 0)
        ow = jax.lax.broadcasted_iota(jnp.int32, (Ho, Wo, 1), 1)
        base = (2 * oh) * W_in + 2 * ow                     # idx of window (0,0)
        best_v, best_i = v00, base
        # strictly-greater update keeps the first occurrence on ties (= argmax)
        for v, off in ((v01, 1), (v10, W_in), (v11, W_in + 1)):
            upd = v > best_v
            best_i = jnp.where(upd, base + off, best_i)     # broadcasts over Cin
            best_v = jnp.where(upd, v, best_v)
        idx_ref[0] = best_i                                 # (Ho, Wo, Cin) int32

        # ---- zero channel pad + residual add + final PReLU ------------------
        short = jnp.concatenate(
            [best_v, jnp.zeros((Ho, Wo, Cout - Cin), jnp.float32)], axis=-1)
        y = conv + short
        af = af_ref[...].reshape(1, 1, Cout)
        out_ref[0] = jnp.where(y >= 0.0, y, af * y).astype(out_ref.dtype)
    return kernel


# ----------------------------------------------------------------------------
# Wrapper-side helpers: BN folding, weight matrix layout
# ----------------------------------------------------------------------------
def _fold_bn(w, bn):
    """Fold eval-mode BatchNorm into conv weight + bias.  w: (Cout, Cin, kh, kw)."""
    scale = bn['gamma'] * jax.lax.rsqrt(bn['var'] + BN_EPS)     # (Cout,)
    bias = bn['beta'] - bn['mean'] * scale
    return w * scale[:, None, None, None], bias


def _w_mat(w):  # (Cout, Cin, kh, kw) -> (kh*kw*Cin, Cout), row order (kh, kw, cin)
    co, ci, kh, kw = w.shape
    return jnp.transpose(w, (2, 3, 1, 0)).reshape(kh * kw * ci, co)


# ----------------------------------------------------------------------------
# Parameter init (deterministic, synthetic)
# ----------------------------------------------------------------------------
def init_params(key, in_channels, out_channels, projection_ratio=4):
    mid = in_channels // projection_ratio
    ks = jax.random.split(key, 12)

    def bn(k, c):
        k1, k2, k3, k4 = jax.random.split(k, 4)
        return dict(gamma=1.0 + 0.1 * jax.random.normal(k1, (c,)),
                    beta=0.1 * jax.random.normal(k2, (c,)),
                    mean=0.1 * jax.random.normal(k3, (c,)),
                    var=1.0 + 0.1 * jnp.abs(jax.random.normal(k4, (c,))))

    def prelu(k, c):
        return 0.25 * jnp.ones((c,), jnp.float32) + 0.05 * jax.random.normal(k, (c,))

    return dict(
        w_reduce=0.1 * jax.random.normal(ks[0], (mid, in_channels, 2, 2)),
        bn_reduce=bn(ks[1], mid),
        alpha_reduce=prelu(ks[2], mid),
        w_main=0.1 * jax.random.normal(ks[3], (mid, mid, 3, 3)),
        bn_main=bn(ks[4], mid),
        alpha_main=prelu(ks[5], mid),
        w_increase=0.1 * jax.random.normal(ks[6], (out_channels, mid, 1, 1)),
        bn_increase=bn(ks[7], out_channels),
        alpha_increase=prelu(ks[8], out_channels),
        alpha_final=prelu(ks[9], out_channels),
    )


# ----------------------------------------------------------------------------
# Forward (wrapper: NCHW in / NCHW out, one Pallas kernel inside)
# ----------------------------------------------------------------------------
def downsampling_bottleneck_forward(x_nchw, params):
    x = jnp.transpose(x_nchw, (0, 2, 3, 1)).astype(jnp.float32)   # NHWC
    N, H, W, Cin = x.shape
    assert H % 2 == 0 and W % 2 == 0
    Ho, Wo = H // 2, W // 2
    mid = params['w_reduce'].shape[0]
    Cout = params['w_increase'].shape[0]
    assert Cout > Cin                  # ENet downsampling always grows channels
    # Keeps the in-kernel (Ho, Wo, C) <-> (Ho*Wo, C) reshapes layout-trivial.
    assert Wo % 8 == 0

    # --- fold BN, build matmul-shaped (BN-folded) weights, bf16 for the MXU --
    w_r, bias_r = _fold_bn(params['w_reduce'], params['bn_reduce'])
    w_m, bias_m = _fold_bn(params['w_main'], params['bn_main'])
    w_i, bias_i = _fold_bn(params['w_increase'], params['bn_increase'])
    w1 = _w_mat(w_r).astype(jnp.bfloat16)                    # (4*Cin, mid)
    w3 = _w_mat(w_m).astype(jnp.bfloat16)                    # (9*mid, mid)
    wi = jnp.transpose(w_i.reshape(Cout, mid), (1, 0)).astype(jnp.bfloat16)

    def row(v):
        return v.reshape(1, -1).astype(jnp.float32)

    # Free (linearization-identical) reshape: (N,H,W,Cin) -> (N,Ho,2,Wo,2*Cin).
    # Gives the kernel the 2x2/s2 window slabs without any strided HBM slices.
    x5 = x.reshape(N, Ho, 2, Wo, 2 * Cin)

    # TODO(synk): at realistic ENet resolutions (and on v7x's 64 MiB VMEM) the
    #             per-image block should be spatially tiled with a 2-row x halo
    #             (grid (N, Ho//TH)) to bound VMEM and feed both TensorCores;
    #             at these test sizes whole-image blocks are a few KiB.
    out, idx = pl.pallas_call(
        _make_fused_kernel(W, Cin, mid, Cout, Ho, Wo),
        out_shape=(jax.ShapeDtypeStruct((N, Ho, Wo, Cout), jnp.float32),
                   jax.ShapeDtypeStruct((N, Ho, Wo, Cin), jnp.int32)),
        grid=(N,),
        in_specs=[
            pl.BlockSpec((1, Ho, 2, Wo, 2 * Cin), lambda n: (n, 0, 0, 0, 0)),
            pl.BlockSpec((4 * Cin, mid), lambda n: (0, 0)),    # weights resident
            pl.BlockSpec((1, mid), lambda n: (0, 0)),
            pl.BlockSpec((1, mid), lambda n: (0, 0)),
            pl.BlockSpec((9 * mid, mid), lambda n: (0, 0)),
            pl.BlockSpec((1, mid), lambda n: (0, 0)),
            pl.BlockSpec((1, mid), lambda n: (0, 0)),
            pl.BlockSpec((mid, Cout), lambda n: (0, 0)),
            pl.BlockSpec((1, Cout), lambda n: (0, 0)),
            pl.BlockSpec((1, Cout), lambda n: (0, 0)),
            pl.BlockSpec((1, Cout), lambda n: (0, 0)),
        ],
        out_specs=(pl.BlockSpec((1, Ho, Wo, Cout), lambda n: (n, 0, 0, 0)),
                   pl.BlockSpec((1, Ho, Wo, Cin), lambda n: (n, 0, 0, 0))),
        scratch_shapes=[pltpu.VMEM((Ho + 2, Wo + 2, mid), jnp.bfloat16)],
        compiler_params=pltpu.CompilerParams(
            dimension_semantics=("parallel",),
            vmem_limit_bytes=VMEM_LIMIT),
    )(x5,
      w1, row(bias_r), row(params['alpha_reduce']),
      w3, row(bias_m), row(params['alpha_main']),
      wi, row(bias_i), row(params['alpha_increase']),
      row(params['alpha_final']))

    out_nchw = jnp.transpose(out, (0, 3, 1, 2))            # (N, Cout, Ho, Wo)
    pool_indices = jnp.transpose(idx, (0, 3, 1, 2))        # (N, Cin, Ho, Wo)
    return out_nchw, pool_indices


# ----------------------------------------------------------------------------
# Pure-JAX f32 reference for validation
# ----------------------------------------------------------------------------
def _bn_prelu_ref(y, bn, alpha):
    y = (y - bn['mean']) / jnp.sqrt(bn['var'] + BN_EPS) * bn['gamma'] + bn['beta']
    return jnp.where(y >= 0, y, alpha * y)


def reference_forward(x_nchw, params):
    x = jnp.transpose(x_nchw, (0, 2, 3, 1)).astype(jnp.float32)
    N, H, W, Cin = x.shape
    Ho, Wo = H // 2, W // 2
    Cout = params['w_increase'].shape[0]
    dn = ('NHWC', 'HWIO', 'NHWC')

    def conv(a, w, stride, pad):
        return jax.lax.conv_general_dilated(a, jnp.transpose(w, (2, 3, 1, 0)),
                                            window_strides=stride, padding=pad,
                                            dimension_numbers=dn)

    b = _bn_prelu_ref(conv(x, params['w_reduce'], (2, 2), 'VALID'),
                      params['bn_reduce'], params['alpha_reduce'])
    b = _bn_prelu_ref(conv(b, params['w_main'], (1, 1), ((1, 1), (1, 1))),
                      params['bn_main'], params['alpha_main'])
    b = _bn_prelu_ref(conv(b, params['w_increase'], (1, 1), 'VALID'),
                      params['bn_increase'], params['alpha_increase'])

    xr = x.reshape(N, Ho, 2, Wo, 2, Cin).transpose(0, 1, 3, 2, 4, 5)
    xr = xr.reshape(N, Ho, Wo, 4, Cin)
    shortcut = jnp.max(xr, axis=3)
    win = jnp.argmax(xr, axis=3).astype(jnp.int32)
    dh, dw = win // 2, win % 2
    oh = jnp.arange(Ho, dtype=jnp.int32).reshape(1, Ho, 1, 1)
    ow = jnp.arange(Wo, dtype=jnp.int32).reshape(1, 1, Wo, 1)
    idx = (2 * oh + dh) * W + (2 * ow + dw)

    shortcut = jnp.pad(shortcut, ((0, 0), (0, 0), (0, 0), (0, Cout - Cin)))
    y = shortcut + b
    a = params['alpha_final'].reshape(1, 1, 1, Cout)
    y = jnp.where(y >= 0, y, a * y)
    return jnp.transpose(y, (0, 3, 1, 2)), jnp.transpose(idx, (0, 3, 1, 2))


if __name__ == "__main__":
    key = jax.random.PRNGKey(0)
    kx, kp = jax.random.split(key)
    in_channels, out_channels = 8, 16
    N, H, W = 2, 16, 16

    x = jax.random.normal(kx, (N, in_channels, H, W), dtype=jnp.float32)
    params = init_params(kp, in_channels, out_channels)

    fwd = jax.jit(downsampling_bottleneck_forward)
    out, idx = fwd(x, params)
    out = jax.block_until_ready(out)
    idx = jax.block_until_ready(idx)

    ref_out, ref_idx = reference_forward(x, params)

    assert out.shape == (N, out_channels, H // 2, W // 2)
    assert idx.shape == (N, in_channels, H // 2, W // 2)
    max_err = float(jnp.max(jnp.abs(out - ref_out)))
    # conv branch uses bf16 MXU operands (f32 accumulation); shortcut/idx exact
    assert jnp.allclose(out, ref_out, atol=2e-2, rtol=2e-2), max_err
    assert jnp.array_equal(idx, ref_idx)

    print("KERNEL_OK")
</pallas_src>

<mosaic_0001>
module attributes {stable_mosaic.version = 11 : i64} {
  func.func @kernel(%arg0: i32, %arg1: memref<1x8x2x8x16xf32, #tpu.memory_space<vmem>>, %arg2: memref<32x2xbf16, #tpu.memory_space<vmem>>, %arg3: memref<1x2xf32, #tpu.memory_space<vmem>>, %arg4: memref<1x2xf32, #tpu.memory_space<vmem>>, %arg5: memref<18x2xbf16, #tpu.memory_space<vmem>>, %arg6: memref<1x2xf32, #tpu.memory_space<vmem>>, %arg7: memref<1x2xf32, #tpu.memory_space<vmem>>, %arg8: memref<2x16xbf16, #tpu.memory_space<vmem>>, %arg9: memref<1x16xf32, #tpu.memory_space<vmem>>, %arg10: memref<1x16xf32, #tpu.memory_space<vmem>>, %arg11: memref<1x16xf32, #tpu.memory_space<vmem>>, %arg12: memref<1x8x8x16xf32, #tpu.memory_space<vmem>>, %arg13: memref<1x8x8x8xi32, #tpu.memory_space<vmem>>, %arg14: memref<10x10x2xbf16, #tpu.memory_space<vmem>>) attributes {dimension_semantics = [#tpu.dimension_semantics<parallel>], iteration_bounds = array<i64: 2>, scalar_prefetch = 0 : i64, scratch_operands = 1 : i64, tpu.core_type = #tpu.core_type<tc>, window_params = [{transform_indices = @transform_0, window_bounds = array<i64: 1, 8, 2, 8, 16>}, {pipeline_mode = #tpu.pipeline_mode<synchronous>, transform_indices = @transform_1, window_bounds = array<i64: 32, 2>}, {pipeline_mode = #tpu.pipeline_mode<synchronous>, transform_indices = @transform_2, window_bounds = array<i64: 1, 2>}, {pipeline_mode = #tpu.pipeline_mode<synchronous>, transform_indices = @transform_3, window_bounds = array<i64: 1, 2>}, {pipeline_mode = #tpu.pipeline_mode<synchronous>, transform_indices = @transform_4, window_bounds = array<i64: 18, 2>}, {pipeline_mode = #tpu.pipeline_mode<synchronous>, transform_indices = @transform_5, window_bounds = array<i64: 1, 2>}, {pipeline_mode = #tpu.pipeline_mode<synchronous>, transform_indices = @transform_6, window_bounds = array<i64: 1, 2>}, {pipeline_mode = #tpu.pipeline_mode<synchronous>, transform_indices = @transform_7, window_bounds = array<i64: 2, 16>}, {pipeline_mode = #tpu.pipeline_mode<synchronous>, transform_indices = @transform_8, window_bounds = array<i64: 1, 16>}, {pipeline_mode = #tpu.pipeline_mode<synchronous>, transform_indices = @transform_9, window_bounds = array<i64: 1, 16>}, {pipeline_mode = #tpu.pipeline_mode<synchronous>, transform_indices = @transform_10, window_bounds = array<i64: 1, 16>}, {transform_indices = @transform_11, window_bounds = array<i64: 1, 8, 8, 16>}, {transform_indices = @transform_12, window_bounds = array<i64: 1, 8, 8, 8>}]} {
    %c0 = arith.constant 0 : index
    %c0_0 = arith.constant 0 : index
    %c0_1 = arith.constant 0 : index
    %c0_2 = arith.constant 0 : index
    %c0_3 = arith.constant 0 : index
    %0 = vector.load %arg1[%c0, %c0_0, %c0_1, %c0_2, %c0_3] : memref<1x8x2x8x16xf32, #tpu.memory_space<vmem>>, vector<1x8x1x8x16xf32>
    %1 = vector.shape_cast %0 : vector<1x8x1x8x16xf32> to vector<8x8x16xf32>
    %c0_4 = arith.constant 0 : index
    %c0_5 = arith.constant 0 : index
    %c1 = arith.constant 1 : index
    %c0_6 = arith.constant 0 : index
    %c0_7 = arith.constant 0 : index
    %2 = vector.load %arg1[%c0_4, %c0_5, %c1, %c0_6, %c0_7] : memref<1x8x2x8x16xf32, #tpu.memory_space<vmem>>, vector<1x8x1x8x16xf32>
    %3 = vector.shape_cast %2 : vector<1x8x1x8x16xf32> to vector<8x8x16xf32>
    %4 = tpu.concatenate %1, %3 in 2 : vector<8x8x16xf32>, vector<8x8x16xf32> -> vector<8x8x32xf32>
    %5 = vector.shape_cast %4 : vector<8x8x32xf32> to vector<64x32xf32>
    %6 = arith.truncf %5 : vector<64x32xf32> to vector<64x32xbf16>
    %c0_8 = arith.constant 0 : index
    %c0_9 = arith.constant 0 : index
    %7 = vector.load %arg2[%c0_8, %c0_9] : memref<32x2xbf16, #tpu.memory_space<vmem>>, vector<32x2xbf16>
    %cst = arith.constant dense<0.000000e+00> : vector<64x2xf32>
    %8 = tpu.matmul %6, %7, %cst {dimension_numbers = #tpu.dot_dimension_numbers<[1], [0], [0], [1], [0, 0, 1, 1], [], []>} : vector<64x32xbf16>, vector<32x2xbf16>, vector<64x2xf32> -> vector<64x2xf32>
    %c0_10 = arith.constant 0 : index
    %c0_11 = arith.constant 0 : index
    %9 = vector.load %arg3[%c0_10, %c0_11] : memref<1x2xf32, #tpu.memory_space<vmem>>, vector<1x2xf32>
    %10 = vector.broadcast %9 : vector<1x2xf32> to vector<64x2xf32>
    %11 = arith.addf %8, %10 : vector<64x2xf32>
    %cst_12 = arith.constant 0.000000e+00 : f32
    %12 = vector.broadcast %cst_12 : f32 to vector<64x2xf32>
    %13 = arith.cmpf oge, %11, %12 : vector<64x2xf32>
    %c0_13 = arith.constant 0 : index
    %c0_14 = arith.constant 0 : index
    %14 = vector.load %arg4[%c0_13, %c0_14] : memref<1x2xf32, #tpu.memory_space<vmem>>, vector<1x2xf32>
    %15 = vector.broadcast %14 : vector<1x2xf32> to vector<64x2xf32>
    %16 = arith.mulf %15, %11 : vector<64x2xf32>
    %17 = arith.select %13, %11, %16 : vector<64x2xi1>, vector<64x2xf32>
    %cst_15 = arith.constant 0.000000e+00 : bf16
    %18 = vector.broadcast %cst_15 : bf16 to vector<10x10x2xbf16>
    %c0_16 = arith.constant 0 : index
    %c0_17 = arith.constant 0 : index
    %c0_18 = arith.constant 0 : index
    %19 = vector.load %arg14[%c0_16, %c0_17, %c0_18] : memref<10x10x2xbf16, #tpu.memory_space<vmem>>, vector<10x10x2xbf16>
    tpu.vector_store %arg14[%c0_16, %c0_17, %c0_18], %18 {strides = array<i32>} : memref<10x10x2xbf16, #tpu.memory_space<vmem>>, vector<10x10x2xbf16>,
    %20 = vector.shape_cast %17 : vector<64x2xf32> to vector<8x8x2xf32>
    %21 = arith.truncf %20 : vector<8x8x2xf32> to vector<8x8x2xbf16>
    %c1_19 = arith.constant 1 : index
    %c1_20 = arith.constant 1 : index
    %c0_21 = arith.constant 0 : index
    %22 = vector.load %arg14[%c1_19, %c1_20, %c0_21] : memref<10x10x2xbf16, #tpu.memory_space<vmem>>, vector<8x8x2xbf16>
    tpu.vector_store %arg14[%c1_19, %c1_20, %c0_21], %21 {strides = array<i32>} : memref<10x10x2xbf16, #tpu.memory_space<vmem>>, vector<8x8x2xbf16>,
    %c0_22 = arith.constant 0 : index
    %c0_23 = arith.constant 0 : index
    %c0_24 = arith.constant 0 : index
    %23 = vector.load %arg14[%c0_22, %c0_23, %c0_24] : memref<10x10x2xbf16, #tpu.memory_space<vmem>>, vector<8x8x2xbf16>
    %24 = vector.shape_cast %23 : vector<8x8x2xbf16> to vector<64x2xbf16>
    %c0_25 = arith.constant 0 : index
    %c1_26 = arith.constant 1 : index
    %c0_27 = arith.constant 0 : index
    %25 = vector.load %arg14[%c0_25, %c1_26, %c0_27] : memref<10x10x2xbf16, #tpu.memory_space<vmem>>, vector<8x8x2xbf16>
    %26 = vector.shape_cast %25 : vector<8x8x2xbf16> to vector<64x2xbf16>
    %c0_28 = arith.constant 0 : index
    %c2 = arith.constant 2 : index
    %c0_29 = arith.constant 0 : index
    %27 = vector.load %arg14[%c0_28, %c2, %c0_29] : memref<10x10x2xbf16, #tpu.memory_space<vmem>>, vector<8x8x2xbf16>
    %28 = vector.shape_cast %27 : vector<8x8x2xbf16> to vector<64x2xbf16>
    %c1_30 = arith.constant 1 : index
    %c0_31 = arith.constant 0 : index
    %c0_32 = arith.constant 0 : index
    %29 = vector.load %arg14[%c1_30, %c0_31, %c0_32] : memref<10x10x2xbf16, #tpu.memory_space<vmem>>, vector<8x8x2xbf16>
    %30 = vector.shape_cast %29 : vector<8x8x2xbf16> to vector<64x2xbf16>
    %c1_33 = arith.constant 1 : index
    %c1_34 = arith.constant 1 : index
    %c0_35 = arith.constant 0 : index
    %31 = vector.load %arg14[%c1_33, %c1_34, %c0_35] : memref<10x10x2xbf16, #tpu.memory_space<vmem>>, vector<8x8x2xbf16>
    %32 = vector.shape_cast %31 : vector<8x8x2xbf16> to vector<64x2xbf16>
    %c1_36 = arith.constant 1 : index
    %c2_37 = arith.constant 2 : index
    %c0_38 = arith.constant 0 : index
    %33 = vector.load %arg14[%c1_36, %c2_37, %c0_38] : memref<10x10x2xbf16, #tpu.memory_space<vmem>>, vector<8x8x2xbf16>
    %34 = vector.shape_cast %33 : vector<8x8x2xbf16> to vector<64x2xbf16>
    %c2_39 = arith.constant 2 : index
    %c0_40 = arith.constant 0 : index
    %c0_41 = arith.constant 0 : index
    %35 = vector.load %arg14[%c2_39, %c0_40, %c0_41] : memref<10x10x2xbf16, #tpu.memory_space<vmem>>, vector<8x8x2xbf16>
    %36 = vector.shape_cast %35 : vector<8x8x2xbf16> to vector<64x2xbf16>
    %c2_42 = arith.constant 2 : index
    %c1_43 = arith.constant 1 : index
    %c0_44 = arith.constant 0 : index
    %37 = vector.load %arg14[%c2_42, %c1_43, %c0_44] : memref<10x10x2xbf16, #tpu.memory_space<vmem>>, vector<8x8x2xbf16>
    %38 = vector.shape_cast %37 : vector<8x8x2xbf16> to vector<64x2xbf16>
    %c2_45 = arith.constant 2 : index
    %c2_46 = arith.constant 2 : index
    %c0_47 = arith.constant 0 : index
    %39 = vector.load %arg14[%c2_45, %c2_46, %c0_47] : memref<10x10x2xbf16, #tpu.memory_space<vmem>>, vector<8x8x2xbf16>
    %40 = vector.shape_cast %39 : vector<8x8x2xbf16> to vector<64x2xbf16>
    %41 = tpu.concatenate %24, %26, %28, %30, %32, %34, %36, %38, %40 in 1 : vector<64x2xbf16>, vector<64x2xbf16>, vector<64x2xbf16>, vector<64x2xbf16>, vector<64x2xbf16>, vector<64x2xbf16>, vector<64x2xbf16>, vector<64x2xbf16>, vector<64x2xbf16> -> vector<64x18xbf16>
    %c0_48 = arith.constant 0 : index
    %c0_49 = arith.constant 0 : index
    %42 = vector.load %arg5[%c0_48, %c0_49] : memref<18x2xbf16, #tpu.memory_space<vmem>>, vector<18x2xbf16>
    %cst_50 = arith.constant dense<0.000000e+00> : vector<64x2xf32>
    %43 = tpu.matmul %41, %42, %cst_50 {dimension_numbers = #tpu.dot_dimension_numbers<[1], [0], [0], [1], [0, 0, 1, 1], [], []>} : vector<64x18xbf16>, vector<18x2xbf16>, vector<64x2xf32> -> vector<64x2xf32>
    %c0_51 = arith.constant 0 : index
    %c0_52 = arith.constant 0 : index
    %44 = vector.load %arg6[%c0_51, %c0_52] : memref<1x2xf32, #tpu.memory_space<vmem>>, vector<1x2xf32>
    %45 = vector.broadcast %44 : vector<1x2xf32> to vector<64x2xf32>
    %46 = arith.addf %43, %45 : vector<64x2xf32>
    %cst_53 = arith.constant 0.000000e+00 : f32
    %47 = vector.broadcast %cst_53 : f32 to vector<64x2xf32>
    %48 = arith.cmpf oge, %46, %47 : vector<64x2xf32>
    %c0_54 = arith.constant 0 : index
    %c0_55 = arith.constant 0 : index
    %49 = vector.load %arg7[%c0_54, %c0_55] : memref<1x2xf32, #tpu.memory_space<vmem>>, vector<1x2xf32>
    %50 = vector.broadcast %49 : vector<1x2xf32> to vector<64x2xf32>
    %51 = arith.mulf %50, %46 : vector<64x2xf32>
    %52 = arith.select %48, %46, %51 : vector<64x2xi1>, vector<64x2xf32>
    %53 = arith.truncf %52 : vector<64x2xf32> to vector<64x2xbf16>
    %c0_56 = arith.constant 0 : index
    %c0_57 = arith.constant 0 : index
    %54 = vector.load %arg8[%c0_56, %c0_57] : memref<2x16xbf16, #tpu.memory_space<vmem>>, vector<2x16xbf16>
    %cst_58 = arith.constant dense<0.000000e+00> : vector<64x16xf32>
    %55 = tpu.matmul %53, %54, %cst_58 {dimension_numbers = #tpu.dot_dimension_numbers<[1], [0], [0], [1], [0, 0, 1, 1], [], []>} : vector<64x2xbf16>, vector<2x16xbf16>, vector<64x16xf32> -> vector<64x16xf32>
    %c0_59 = arith.constant 0 : index
    %c0_60 = arith.constant 0 : index
    %56 = vector.load %arg9[%c0_59, %c0_60] : memref<1x16xf32, #tpu.memory_space<vmem>>, vector<1x16xf32>
    %57 = vector.broadcast %56 : vector<1x16xf32> to vector<64x16xf32>
    %58 = arith.addf %55, %57 : vector<64x16xf32>
    %cst_61 = arith.constant 0.000000e+00 : f32
    %59 = vector.broadcast %cst_61 : f32 to vector<64x16xf32>
    %60 = arith.cmpf oge, %58, %59 : vector<64x16xf32>
    %c0_62 = arith.constant 0 : index
    %c0_63 = arith.constant 0 : index
    %61 = vector.load %arg10[%c0_62, %c0_63] : memref<1x16xf32, #tpu.memory_space<vmem>>, vector<1x16xf32>
    %62 = vector.broadcast %61 : vector<1x16xf32> to vector<64x16xf32>
    %63 = arith.mulf %62, %58 : vector<64x16xf32>
    %64 = arith.select %60, %58, %63 : vector<64x16xi1>, vector<64x16xf32>
    %65 = vector.shape_cast %64 : vector<64x16xf32> to vector<8x8x16xf32>
    %66 = vector.extract_strided_slice %1 {offsets = [0, 0, 0], sizes = [8, 8, 8], strides = [1, 1, 1]} : vector<8x8x16xf32> to vector<8x8x8xf32>
    %67 = vector.extract_strided_slice %1 {offsets = [0, 0, 8], sizes = [8, 8, 8], strides = [1, 1, 1]} : vector<8x8x16xf32> to vector<8x8x8xf32>
    %68 = vector.extract_strided_slice %3 {offsets = [0, 0, 0], sizes = [8, 8, 8], strides = [1, 1, 1]} : vector<8x8x16xf32> to vector<8x8x8xf32>
    %69 = vector.extract_strided_slice %3 {offsets = [0, 0, 8], sizes = [8, 8, 8], strides = [1, 1, 1]} : vector<8x8x16xf32> to vector<8x8x8xf32>
    %70 = tpu.iota {dimensions = array<i32: 0>} : vector<8x8x1xi32>
    %71 = tpu.iota {dimensions = array<i32: 1>} : vector<8x8x1xi32>
    %c2_i32 = arith.constant 2 : i32
    %72 = vector.broadcast %c2_i32 : i32 to vector<8x8x1xi32>
    %73 = arith.muli %72, %70 : vector<8x8x1xi32>
    %c16_i32 = arith.constant 16 : i32
    %74 = vector.broadcast %c16_i32 : i32 to vector<8x8x1xi32>
    %75 = arith.muli %73, %74 : vector<8x8x1xi32>
    %c2_i32_64 = arith.constant 2 : i32
    %76 = vector.broadcast %c2_i32_64 : i32 to vector<8x8x1xi32>
    %77 = arith.muli %76, %71 : vector<8x8x1xi32>
    %78 = arith.addi %75, %77 : vector<8x8x1xi32>
    %79 = arith.cmpf ogt, %67, %66 : vector<8x8x8xf32>
    %c1_i32 = arith.constant 1 : i32
    %80 = vector.broadcast %c1_i32 : i32 to vector<8x8x1xi32>
    %81 = arith.addi %78, %80 : vector<8x8x1xi32>
    %82 = vector.shape_cast %81 : vector<8x8x1xi32> to vector<8x8x1xi32>
    %83 = vector.broadcast %82 : vector<8x8x1xi32> to vector<8x8x8xi32>
    %84 = vector.shape_cast %78 : vector<8x8x1xi32> to vector<8x8x1xi32>
    %85 = vector.broadcast %84 : vector<8x8x1xi32> to vector<8x8x8xi32>
    %86 = arith.select %79, %83, %85 : vector<8x8x8xi1>, vector<8x8x8xi32>
    %87 = arith.select %79, %67, %66 : vector<8x8x8xi1>, vector<8x8x8xf32>
    %88 = arith.cmpf ogt, %68, %87 : vector<8x8x8xf32>
    %c16_i32_65 = arith.constant 16 : i32
    %89 = vector.broadcast %c16_i32_65 : i32 to vector<8x8x1xi32>
    %90 = arith.addi %78, %89 : vector<8x8x1xi32>
    %91 = vector.shape_cast %90 : vector<8x8x1xi32> to vector<8x8x1xi32>
    %92 = vector.broadcast %91 : vector<8x8x1xi32> to vector<8x8x8xi32>
    %93 = arith.select %88, %92, %86 : vector<8x8x8xi1>, vector<8x8x8xi32>
    %94 = arith.select %88, %68, %87 : vector<8x8x8xi1>, vector<8x8x8xf32>
    %95 = arith.cmpf ogt, %69, %94 : vector<8x8x8xf32>
    %c17_i32 = arith.constant 17 : i32
    %96 = vector.broadcast %c17_i32 : i32 to vector<8x8x1xi32>
    %97 = arith.addi %78, %96 : vector<8x8x1xi32>
    %98 = vector.shape_cast %97 : vector<8x8x1xi32> to vector<8x8x1xi32>
    %99 = vector.broadcast %98 : vector<8x8x1xi32> to vector<8x8x8xi32>
    %100 = arith.select %95, %99, %93 : vector<8x8x8xi1>, vector<8x8x8xi32>
    %101 = arith.select %95, %69, %94 : vector<8x8x8xi1>, vector<8x8x8xf32>
    %c0_66 = arith.constant 0 : index
    %c0_67 = arith.constant 0 : index
    %c0_68 = arith.constant 0 : index
    %c0_69 = arith.constant 0 : index
    %102 = vector.load %arg13[%c0_66, %c0_67, %c0_68, %c0_69] : memref<1x8x8x8xi32, #tpu.memory_space<vmem>>, vector<1x8x8x8xi32>
    %103 = vector.shape_cast %102 : vector<1x8x8x8xi32> to vector<8x8x8xi32>
    %104 = vector.shape_cast %100 : vector<8x8x8xi32> to vector<1x8x8x8xi32>
    tpu.vector_store %arg13[%c0_66, %c0_67, %c0_68, %c0_69], %104 {strides = array<i32>} : memref<1x8x8x8xi32, #tpu.memory_space<vmem>>, vector<1x8x8x8xi32>,
    %cst_70 = arith.constant 0.000000e+00 : f32
    %105 = vector.broadcast %cst_70 : f32 to vector<8x8x8xf32>
    %106 = tpu.concatenate %101, %105 in 2 : vector<8x8x8xf32>, vector<8x8x8xf32> -> vector<8x8x16xf32>
    %107 = arith.addf %65, %106 : vector<8x8x16xf32>
    %c0_71 = arith.constant 0 : index
    %c0_72 = arith.constant 0 : index
    %108 = vector.load %arg11[%c0_71, %c0_72] : memref<1x16xf32, #tpu.memory_space<vmem>>, vector<1x16xf32>
    %109 = vector.shape_cast %108 : vector<1x16xf32> to vector<1x1x16xf32>
    %cst_73 = arith.constant 0.000000e+00 : f32
    %110 = vector.broadcast %cst_73 : f32 to vector<8x8x16xf32>
    %111 = arith.cmpf oge, %107, %110 : vector<8x8x16xf32>
    %112 = vector.broadcast %109 : vector<1x1x16xf32> to vector<8x8x16xf32>
    %113 = arith.mulf %112, %107 : vector<8x8x16xf32>
    %114 = arith.select %111, %107, %113 : vector<8x8x16xi1>, vector<8x8x16xf32>
    %c0_74 = arith.constant 0 : index
    %c0_75 = arith.constant 0 : index
    %c0_76 = arith.constant 0 : index
    %c0_77 = arith.constant 0 : index
    %115 = vector.load %arg12[%c0_74, %c0_75, %c0_76, %c0_77] : memref<1x8x8x16xf32, #tpu.memory_space<vmem>>, vector<1x8x8x16xf32>
    %116 = vector.shape_cast %115 : vector<1x8x8x16xf32> to vector<8x8x16xf32>
    %117 = vector.shape_cast %114 : vector<8x8x16xf32> to vector<1x8x8x16xf32>
    tpu.vector_store %arg12[%c0_74, %c0_75, %c0_76, %c0_77], %117 {strides = array<i32>} : memref<1x8x8x16xf32, #tpu.memory_space<vmem>>, vector<1x8x8x16xf32>,
    return
  }
  func.func @transform_0(%arg0: i32) -> (i32, i32, i32, i32, i32) {
    %c0_i32 = arith.constant 0 : i32
    %c0_i32_0 = arith.constant 0 : i32
    %c0_i32_1 = arith.constant 0 : i32
    %c0_i32_2 = arith.constant 0 : i32
    %c0_i32_3 = arith.constant 0 : i32
    return %arg0, %c0_i32, %c0_i32_0, %c0_i32_1, %c0_i32_2 : i32, i32, i32, i32, i32
  }
  func.func @transform_1(%arg0: i32) -> (i32, i32) {
    %c0_i32 = arith.constant 0 : i32
    %c0_i32_0 = arith.constant 0 : i32
    %c0_i32_1 = arith.constant 0 : i32
    return %c0_i32, %c0_i32_0 : i32, i32
  }
  func.func @transform_2(%arg0: i32) -> (i32, i32) {
    %c0_i32 = arith.constant 0 : i32
    %c0_i32_0 = arith.constant 0 : i32
    %c0_i32_1 = arith.constant 0 : i32
    return %c0_i32, %c0_i32_0 : i32, i32
  }
  func.func @transform_3(%arg0: i32) -> (i32, i32) {
    %c0_i32 = arith.constant 0 : i32
    %c0_i32_0 = arith.constant 0 : i32
    %c0_i32_1 = arith.constant 0 : i32
    return %c0_i32, %c0_i32_0 : i32, i32
  }
  func.func @transform_4(%arg0: i32) -> (i32, i32) {
    %c0_i32 = arith.constant 0 : i32
    %c0_i32_0 = arith.constant 0 : i32
    %c0_i32_1 = arith.constant 0 : i32
    return %c0_i32, %c0_i32_0 : i32, i32
  }
  func.func @transform_5(%arg0: i32) -> (i32, i32) {
    %c0_i32 = arith.constant 0 : i32
    %c0_i32_0 = arith.constant 0 : i32
    %c0_i32_1 = arith.constant 0 : i32
    return %c0_i32, %c0_i32_0 : i32, i32
  }
  func.func @transform_6(%arg0: i32) -> (i32, i32) {
    %c0_i32 = arith.constant 0 : i32
    %c0_i32_0 = arith.constant 0 : i32
    %c0_i32_1 = arith.constant 0 : i32
    return %c0_i32, %c0_i32_0 : i32, i32
  }
  func.func @transform_7(%arg0: i32) -> (i32, i32) {
    %c0_i32 = arith.constant 0 : i32
    %c0_i32_0 = arith.constant 0 : i32
    %c0_i32_1 = arith.constant 0 : i32
    return %c0_i32, %c0_i32_0 : i32, i32
  }
  func.func @transform_8(%arg0: i32) -> (i32, i32) {
    %c0_i32 = arith.constant 0 : i32
    %c0_i32_0 = arith.constant 0 : i32
    %c0_i32_1 = arith.constant 0 : i32
    return %c0_i32, %c0_i32_0 : i32, i32
  }
  func.func @transform_9(%arg0: i32) -> (i32, i32) {
    %c0_i32 = arith.constant 0 : i32
    %c0_i32_0 = arith.constant 0 : i32
    %c0_i32_1 = arith.constant 0 : i32
    return %c0_i32, %c0_i32_0 : i32, i32
  }
  func.func @transform_10(%arg0: i32) -> (i32, i32) {
    %c0_i32 = arith.constant 0 : i32
    %c0_i32_0 = arith.constant 0 : i32
    %c0_i32_1 = arith.constant 0 : i32
    return %c0_i32, %c0_i32_0 : i32, i32
  }
  func.func @transform_11(%arg0: i32) -> (i32, i32, i32, i32) {
    %c0_i32 = arith.constant 0 : i32
    %c0_i32_0 = arith.constant 0 : i32
    %c0_i32_1 = arith.constant 0 : i32
    %c0_i32_2 = arith.constant 0 : i32
    return %arg0, %c0_i32, %c0_i32_0, %c0_i32_1 : i32, i32, i32, i32
  }
  func.func @transform_12(%arg0: i32) -> (i32, i32, i32, i32) {
    %c0_i32 = arith.constant 0 : i32
    %c0_i32_0 = arith.constant 0 : i32
    %c0_i32_1 = arith.constant 0 : i32
    %c0_i32_2 = arith.constant 0 : i32
    return %arg0, %c0_i32, %c0_i32_0, %c0_i32_1 : i32, i32, i32, i32
  }
}

</mosaic_0001>

<llo_original>
// kernel: downsampling_bottleneck_forward.1
$region0: #{downsampling_bottleneck_forward.1}
  #allocation0 [shape = 'u32[]', space=smem, size = 0x4, offset = 0x4, fixed_abs, tag = 'smem constant byte address 0x4 - core index']
  #allocation1 [shape = 'u32[144,128]{1,0:T(1,128)}', space=vmem, size = 0x12000, scoped, tag = 'internal scratch']
  #allocation2 [shape = 'bf16[10,10,2]{2,1,0:T(8,128)(2,1)}', space=vmem, size = 0xa000, scoped, tag = 'scratch operand']
  %s0 = inlined_call_operand.vmem [shape: f32[2,8,2,8,16], index: 0, kind: input, shape index: {}]
  %s1 = inlined_call_operand.vmem [shape: bf16[32,2], index: 1, kind: input, shape index: {}]
  %s2 = inlined_call_operand.vmem [shape: f32[1,2], index: 2, kind: input, shape index: {}]
  %s3 = inlined_call_operand.vmem [shape: f32[1,2], index: 3, kind: input, shape index: {}]
  %s4 = inlined_call_operand.vmem [shape: bf16[18,2], index: 4, kind: input, shape index: {}]
  %s5 = inlined_call_operand.vmem [shape: f32[1,2], index: 5, kind: input, shape index: {}]
  %s6 = inlined_call_operand.vmem [shape: f32[1,2], index: 6, kind: input, shape index: {}]
  %s7 = inlined_call_operand.vmem [shape: bf16[2,16], index: 7, kind: input, shape index: {}]
  %s8 = inlined_call_operand.vmem [shape: f32[1,16], index: 8, kind: input, shape index: {}]
  %s9 = inlined_call_operand.vmem [shape: f32[1,16], index: 9, kind: input, shape index: {}]
  %s10 = inlined_call_operand.vmem [shape: f32[1,16], index: 10, kind: input, shape index: {}]
  %s11 = inlined_call_operand.hbm [shape: f32[2,8,8,16], index: 11, kind: output, shape index: {0}]
  %s12 = inlined_call_operand.vmem [shape: s32[2,8,8,8], index: 12, kind: output, shape index: {1}]
  %13 = xla_tuple %s11, %s12
  %s14 = sld [smem:[#allocation0]]
  $region85: #{downsampling_bottleneck_forward.1} parent=0
    _
  %s16 = ssub.s32 1, %s14
  %s17 = scalar_select 0, %s16, %s14
  $region1: #{downsampling_bottleneck_forward.1} parent=0
    #allocation3 [shape = 'u8[65536]{0}', space=vmem, size = 0x10000, scoped, tag = 'output window, operand 0']
    #allocation4 [shape = 's32[2]{0}', space=sflag, size = 0x8, scoped, tag = 'scoped memory for downsampling_bottleneck_forward.1']
    %18 = vsyncpa [#allocation4], 0
    %s19 = scalar_lea.sflag [#allocation4], 1
    %20 = vsyncpa %s19, 0
    loop: start=0, step=1, limit=4
    $region2: #{downsampling_bottleneck_forward.1} parent=1 // loop_pre_header
      _
    $region3: #{downsampling_bottleneck_forward.1} parent=1 // loop_header
      %s22 = sphi 0, %s26
      %p23 = scmp.ge.s32.totalorder %s22, 4
      %s32 = sphi 0, %s34
      %s35 = sphi 0, %s32
      %s36 = sphi 0, %s35
      %s52 = sphi 0, %s36
      %s56 = sphi 0, %s56
      %s58 = sphi 0, %s56
      %s59 = sphi 0, %s58
      %s73 = sphi 0, %s59
      %s77 = sphi 0, %s77
      %s79 = sphi 0, %s77
      %s80 = sphi 0, %s79
      %s94 = sphi 0, %s80
      %s98 = sphi 0, %s98
      %s100 = sphi 0, %s98
      %s101 = sphi 0, %s100
      %s115 = sphi 0, %s101
      %s119 = sphi 0, %s119
      %s121 = sphi 0, %s119
      %s122 = sphi 0, %s121
      %s136 = sphi 0, %s122
      %s140 = sphi 0, %s140
      %s142 = sphi 0, %s140
      %s143 = sphi 0, %s142
      %s157 = sphi 0, %s143
      %s161 = sphi 0, %s161
      %s163 = sphi 0, %s161
      %s164 = sphi 0, %s163
      %s178 = sphi 0, %s164
      %s182 = sphi 0, %s182
      %s184 = sphi 0, %s182
      %s185 = sphi 0, %s184
      %s199 = sphi 0, %s185
      %s203 = sphi 0, %s203
      %s205 = sphi 0, %s203
      %s206 = sphi 0, %s205
      %s220 = sphi 0, %s206
      %s224 = sphi 0, %s224
      %s226 = sphi 0, %s224
      %s227 = sphi 0, %s226
      %s241 = sphi 0, %s227
      %s245 = sphi 0, %s245
      %s247 = sphi 0, %s245
      %s248 = sphi 0, %s247
      %s262 = sphi 0, %s248
      %s268 = sphi 0, %s270
      %s271 = sphi 0, %s268
      %s272 = sphi 0, %s271
      %s288 = sphi 0, %s272
      %s294 = sphi 0, %s296
      %s297 = sphi 0, %s294
      %s298 = sphi 0, %s297
      %s314 = sphi 0, %s298
    $region4: #{downsampling_bottleneck_forward.1} parent=1 // loop_header_branch
      %25 = sbr.rel (%p23) target = $region8
    $region5: #{downsampling_bottleneck_forward.1} parent=1 // loop_body
      %s27 = ssub.s32 %s22, 1
      %s28 = ssub.s32 %s22, 2
      %s29 = sadd.s32 %s22, 1
      %s30 = ssub.s32 %s22, %s29
      %p31 = scmp.eq.s32.totalorder %s30, 0
      %s33 = sadd.s32 %s32, 1
      %s34 = scalar_select %p31, %s32, %s33
      %p37 = pneg %p31
      %p38 = scmp.eq.s32.totalorder %s22, 1
      %p39 = por %p37, %p38
      %p40 = scmp.ne.s32.totalorder %s32, %s35
      %p41 = scmp.eq.s32.totalorder %s22, 0
      %p42 = por %p40, %p41
      %p43 = scmp.ne.s32.totalorder %s32, %s35
      %p44 = scmp.eq.s32.totalorder %s27, 1
      %p45 = por %p43, %p44
      %p46 = scmp.ne.s32.totalorder %s35, %s36
      %p47 = scmp.eq.s32.totalorder %s27, 0
      %p48 = por %p46, %p47
      %p49 = scmp.ne.s32.totalorder %s35, %s36
      %p50 = scmp.eq.s32.totalorder %s28, 1
      %p51 = por %p49, %p50
      %p53 = scmp.ne.s32.totalorder %s36, %s52
      %p54 = scmp.eq.s32.totalorder %s28, 0
      %p55 = por %p53, %p54
      %s57 = sadd.s32 %s56, 1
      %p60 = scmp.eq.s32.totalorder %s22, 1
      %p61 = scmp.ne.s32.totalorder %s56, %s58
      %p62 = scmp.eq.s32.totalorder %s22, 0
      %p63 = por %p61, %p62
      %p64 = scmp.ne.s32.totalorder %s56, %s58
      %p65 = scmp.eq.s32.totalorder %s27, 1
      %p66 = por %p64, %p65
      %p67 = scmp.ne.s32.totalorder %s58, %s59
      %p68 = scmp.eq.s32.totalorder %s27, 0
      %p69 = por %p67, %p68
      %p70 = scmp.ne.s32.totalorder %s58, %s59
      %p71 = scmp.eq.s32.totalorder %s28, 1
      %p72 = por %p70, %p71
      %p74 = scmp.ne.s32.totalorder %s59, %s73
      %p75 = scmp.eq.s32.totalorder %s28, 0
      %p76 = por %p74, %p75
      %s78 = sadd.s32 %s77, 1
      %p81 = scmp.eq.s32.totalorder %s22, 1
      %p82 = scmp.ne.s32.totalorder %s77, %s79
      %p83 = scmp.eq.s32.totalorder %s22, 0
      %p84 = por %p82, %p83
      %p85 = scmp.ne.s32.totalorder %s77, %s79
      %p86 = scmp.eq.s32.totalorder %s27, 1
      %p87 = por %p85, %p86
      %p88 = scmp.ne.s32.totalorder %s79, %s80
      %p89 = scmp.eq.s32.totalorder %s27, 0
      %p90 = por %p88, %p89
      %p91 = scmp.ne.s32.totalorder %s79, %s80
      %p92 = scmp.eq.s32.totalorder %s28, 1
      %p93 = por %p91, %p92
      %p95 = scmp.ne.s32.totalorder %s80, %s94
      %p96 = scmp.eq.s32.totalorder %s28, 0
      %p97 = por %p95, %p96
      %s99 = sadd.s32 %s98, 1
      %p102 = scmp.eq.s32.totalorder %s22, 1
      %p103 = scmp.ne.s32.totalorder %s98, %s100
      %p104 = scmp.eq.s32.totalorder %s22, 0
      %p105 = por %p103, %p104
      %p106 = scmp.ne.s32.totalorder %s98, %s100
      %p107 = scmp.eq.s32.totalorder %s27, 1
      %p108 = por %p106, %p107
      %p109 = scmp.ne.s32.totalorder %s100, %s101
      %p110 = scmp.eq.s32.totalorder %s27, 0
      %p111 = por %p109, %p110
      %p112 = scmp.ne.s32.totalorder %s100, %s101
      %p113 = scmp.eq.s32.totalorder %s28, 1
      %p114 = por %p112, %p113
      %p116 = scmp.ne.s32.totalorder %s101, %s115
      %p117 = scmp.eq.s32.totalorder %s28, 0
      %p118 = por %p116, %p117
      %s120 = sadd.s32 %s119, 1
      %p123 = scmp.eq.s32.totalorder %s22, 1
      %p124 = scmp.ne.s32.totalorder %s119, %s121
      %p125 = scmp.eq.s32.totalorder %s22, 0
      %p126 = por %p124, %p125
      %p127 = scmp.ne.s32.totalorder %s119, %s121
      %p128 = scmp.eq.s32.totalorder %s27, 1
      %p129 = por %p127, %p128
      %p130 = scmp.ne.s32.totalorder %s121, %s122
      %p131 = scmp.eq.s32.totalorder %s27, 0
      %p132 = por %p130, %p131
      %p133 = scmp.ne.s32.totalorder %s121, %s122
      %p134 = scmp.eq.s32.totalorder %s28, 1
      %p135 = por %p133, %p134
      %p137 = scmp.ne.s32.totalorder %s122, %s136
      %p138 = scmp.eq.s32.totalorder %s28, 0
      %p139 = por %p137, %p138
      %s141 = sadd.s32 %s140, 1
      %p144 = scmp.eq.s32.totalorder %s22, 1
      %p145 = scmp.ne.s32.totalorder %s140, %s142
      %p146 = scmp.eq.s32.totalorder %s22, 0
      %p147 = por %p145, %p146
      %p148 = scmp.ne.s32.totalorder %s140, %s142
      %p149 = scmp.eq.s32.totalorder %s27, 1
      %p150 = por %p148, %p149
      %p151 = scmp.ne.s32.totalorder %s142, %s143
      %p152 = scmp.eq.s32.totalorder %s27, 0
      %p153 = por %p151, %p152
      %p154 = scmp.ne.s32.totalorder %s142, %s143
      %p155 = scmp.eq.s32.totalorder %s28, 1
      %p156 = por %p154, %p155
      %p158 = scmp.ne.s32.totalorder %s143, %s157
      %p159 = scmp.eq.s32.totalorder %s28, 0
      %p160 = por %p158, %p159
      %s162 = sadd.s32 %s161, 1
      %p165 = scmp.eq.s32.totalorder %s22, 1
      %p166 = scmp.ne.s32.totalorder %s161, %s163
      %p167 = scmp.eq.s32.totalorder %s22, 0
      %p168 = por %p166, %p167
      %p169 = scmp.ne.s32.totalorder %s161, %s163
      %p170 = scmp.eq.s32.totalorder %s27, 1
      %p171 = por %p169, %p170
      %p172 = scmp.ne.s32.totalorder %s163, %s164
      %p173 = scmp.eq.s32.totalorder %s27, 0
      %p174 = por %p172, %p173
      %p175 = scmp.ne.s32.totalorder %s163, %s164
      %p176 = scmp.eq.s32.totalorder %s28, 1
      %p177 = por %p175, %p176
      %p179 = scmp.ne.s32.totalorder %s164, %s178
      %p180 = scmp.eq.s32.totalorder %s28, 0
      %p181 = por %p179, %p180
      %s183 = sadd.s32 %s182, 1
      %p186 = scmp.eq.s32.totalorder %s22, 1
      %p187 = scmp.ne.s32.totalorder %s182, %s184
      %p188 = scmp.eq.s32.totalorder %s22, 0
      %p189 = por %p187, %p188
      %p190 = scmp.ne.s32.totalorder %s182, %s184
      %p191 = scmp.eq.s32.totalorder %s27, 1
      %p192 = por %p190, %p191
      %p193 = scmp.ne.s32.totalorder %s184, %s185
      %p194 = scmp.eq.s32.totalorder %s27, 0
      %p195 = por %p193, %p194
      %p196 = scmp.ne.s32.totalorder %s184, %s185
      %p197 = scmp.eq.s32.totalorder %s28, 1
      %p198 = por %p196, %p197
      %p200 = scmp.ne.s32.totalorder %s185, %s199
      %p201 = scmp.eq.s32.totalorder %s28, 0
      %p202 = por %p200, %p201
      %s204 = sadd.s32 %s203, 1
      %p207 = scmp.eq.s32.totalorder %s22, 1
      %p208 = scmp.ne.s32.totalorder %s203, %s205
      %p209 = scmp.eq.s32.totalorder %s22, 0
      %p210 = por %p208, %p209
      %p211 = scmp.ne.s32.totalorder %s203, %s205
      %p212 = scmp.eq.s32.totalorder %s27, 1
      %p213 = por %p211, %p212
      %p214 = scmp.ne.s32.totalorder %s205, %s206
      %p215 = scmp.eq.s32.totalorder %s27, 0
      %p216 = por %p214, %p215
      %p217 = scmp.ne.s32.totalorder %s205, %s206
      %p218 = scmp.eq.s32.totalorder %s28, 1
      %p219 = por %p217, %p218
      %p221 = scmp.ne.s32.totalorder %s206, %s220
      %p222 = scmp.eq.s32.totalorder %s28, 0
      %p223 = por %p221, %p222
      %s225 = sadd.s32 %s224, 1
      %p228 = scmp.eq.s32.totalorder %s22, 1
      %p229 = scmp.ne.s32.totalorder %s224, %s226
      %p230 = scmp.eq.s32.totalorder %s22, 0
      %p231 = por %p229, %p230
      %p232 = scmp.ne.s32.totalorder %s224, %s226
      %p233 = scmp.eq.s32.totalorder %s27, 1
      %p234 = por %p232, %p233
      %p235 = scmp.ne.s32.totalorder %s226, %s227
      %p236 = scmp.eq.s32.totalorder %s27, 0
      %p237 = por %p235, %p236
      %p238 = scmp.ne.s32.totalorder %s226, %s227
      %p239 = scmp.eq.s32.totalorder %s28, 1
      %p240 = por %p238, %p239
      %p242 = scmp.ne.s32.totalorder %s227, %s241
      %p243 = scmp.eq.s32.totalorder %s28, 0
      %p244 = por %p242, %p243
      %s246 = sadd.s32 %s245, 1
      %p249 = scmp.eq.s32.totalorder %s22, 1
      %p250 = scmp.ne.s32.totalorder %s245, %s247
      %p251 = scmp.eq.s32.totalorder %s22, 0
      %p252 = por %p250, %p251
      %p253 = scmp.ne.s32.totalorder %s245, %s247
      %p254 = scmp.eq.s32.totalorder %s27, 1
      %p255 = por %p253, %p254
      %p256 = scmp.ne.s32.totalorder %s247, %s248
      %p257 = scmp.eq.s32.totalorder %s27, 0
      %p258 = por %p256, %p257
      %p259 = scmp.ne.s32.totalorder %s247, %s248
      %p260 = scmp.eq.s32.totalorder %s28, 1
      %p261 = por %p259, %p260
      %p263 = scmp.ne.s32.totalorder %s248, %s262
      %p264 = scmp.eq.s32.totalorder %s28, 0
      %p265 = por %p263, %p264
      %s266 = ssub.s32 %s22, %s29
      %p267 = scmp.eq.s32.totalorder %s266, 0
      %s269 = sadd.s32 %s268, 1
      %s270 = scalar_select %p267, %s268, %s269
      %p273 = pneg %p267
      %p274 = scmp.eq.s32.totalorder %s22, 1
      %p275 = por %p273, %p274
      %p276 = scmp.ne.s32.totalorder %s268, %s271
      %p277 = scmp.eq.s32.totalorder %s22, 0
      %p278 = por %p276, %p277
      %p279 = scmp.ne.s32.totalorder %s268, %s271
      %p280 = scmp.eq.s32.totalorder %s27, 1
      %p281 = por %p279, %p280
      %p282 = scmp.ne.s32.totalorder %s271, %s272
      %p283 = scmp.eq.s32.totalorder %s27, 0
      %p284 = por %p282, %p283
      %p285 = scmp.ne.s32.totalorder %s271, %s272
      %p286 = scmp.eq.s32.totalorder %s28, 1
      %p287 = por %p285, %p286
      %p289 = scmp.ne.s32.totalorder %s272, %s288
      %p290 = scmp.eq.s32.totalorder %s28, 0
      %p291 = por %p289, %p290
      %s292 = ssub.s32 %s22, %s29
      %p293 = scmp.eq.s32.totalorder %s292, 0
      %s295 = sadd.s32 %s294, 1
      %s296 = scalar_select %p293, %s294, %s295
      %p299 = pneg %p293
      %p300 = scmp.eq.s32.totalorder %s22, 1
      %p301 = por %p299, %p300
      %p302 = scmp.ne.s32.totalorder %s294, %s297
      %p303 = scmp.eq.s32.totalorder %s22, 0
      %p304 = por %p302, %p303
      %p305 = scmp.ne.s32.totalorder %s294, %s297
      %p306 = scmp.eq.s32.totalorder %s27, 1
      %p307 = por %p305, %p306
      %p308 = scmp.ne.s32.totalorder %s297, %s298
      %p309 = scmp.eq.s32.totalorder %s27, 0
      %p310 = por %p308, %p309
      %p311 = scmp.ne.s32.totalorder %s297, %s298
      %p312 = scmp.eq.s32.totalorder %s28, 1
      %p313 = por %p311, %p312
      %p315 = scmp.ne.s32.totalorder %s298, %s314
      %p316 = scmp.eq.s32.totalorder %s28, 0
      %p317 = por %p315, %p316
      %p318 = scmp.le.s32.totalorder 1, %s22
      %p319 = scmp.lt.s32.totalorder %s22, 3
      %p320 = pnand %p318, %p319
      %p321 = pneg %p320
      // Predicated region
      $region9: #{downsampling_bottleneck_forward.1} parent=5 // pred_check
        _
      $region10: #{downsampling_bottleneck_forward.1} parent=5 // pred_check_branch
        %323 = sbr.rel (%p320) target = $region12
      $region11: #{downsampling_bottleneck_forward.1} parent=5 // pred_region
        %s324 = ssub.s32 %s22, 1
        // Predicated region
        $region13: #{downsampling_bottleneck_forward.1} parent=11 // pred_check
          %p325 = pneg %p69
        $region14: #{downsampling_bottleneck_forward.1} parent=11 // pred_check_branch
          %327 = sbr.rel (%p325) target = $region16
        $region15: #{downsampling_bottleneck_forward.1} parent=11 // pred_region
          _
        $region16: #{downsampling_bottleneck_forward.1} parent=11 // pred_fallthru
          _
        // Predicated region
        $region17: #{downsampling_bottleneck_forward.1} parent=11 // pred_check
          %p328 = pneg %p90
        $region18: #{downsampling_bottleneck_forward.1} parent=11 // pred_check_branch
          %330 = sbr.rel (%p328) target = $region20
        $region19: #{downsampling_bottleneck_forward.1} parent=11 // pred_region
          _
        $region20: #{downsampling_bottleneck_forward.1} parent=11 // pred_fallthru
          _
        // Predicated region
        $region21: #{downsampling_bottleneck_forward.1} parent=11 // pred_check
          %p331 = pneg %p111
        $region22: #{downsampling_bottleneck_forward.1} parent=11 // pred_check_branch
          %333 = sbr.rel (%p331) target = $region24
        $region23: #{downsampling_bottleneck_forward.1} parent=11 // pred_region
          _
        $region24: #{downsampling_bottleneck_forward.1} parent=11 // pred_fallthru
          _
        // Predicated region
        $region25: #{downsampling_bottleneck_forward.1} parent=11 // pred_check
          %p334 = pneg %p132
        $region26: #{downsampling_bottleneck_forward.1} parent=11 // pred_check_branch
          %336 = sbr.rel (%p334) target = $region28
        $region27: #{downsampling_bottleneck_forward.1} parent=11 // pred_region
          _
        $region28: #{downsampling_bottleneck_forward.1} parent=11 // pred_fallthru
          _
        // Predicated region
        $region29: #{downsampling_bottleneck_forward.1} parent=11 // pred_check
          %p337 = pneg %p153
        $region30: #{downsampling_bottleneck_forward.1} parent=11 // pred_check_branch
          %339 = sbr.rel (%p337) target = $region32
        $region31: #{downsampling_bottleneck_forward.1} parent=11 // pred_region
          _
        $region32: #{downsampling_bottleneck_forward.1} parent=11 // pred_fallthru
          _
        // Predicated region
        $region33: #{downsampling_bottleneck_forward.1} parent=11 // pred_check
          %p340 = pneg %p174
        $region34: #{downsampling_bottleneck_forward.1} parent=11 // pred_check_branch
          %342 = sbr.rel (%p340) target = $region36
        $region35: #{downsampling_bottleneck_forward.1} parent=11 // pred_region
          _
        $region36: #{downsampling_bottleneck_forward.1} parent=11 // pred_fallthru
          _
        // Predicated region
        $region37: #{downsampling_bottleneck_forward.1} parent=11 // pred_check
          %p343 = pneg %p195
        $region38: #{downsampling_bottleneck_forward.1} parent=11 // pred_check_branch
          %345 = sbr.rel (%p343) target = $region40
        $region39: #{downsampling_bottleneck_forward.1} parent=11 // pred_region
          _
        $region40: #{downsampling_bottleneck_forward.1} parent=11 // pred_fallthru
          _
        // Predicated region
        $region41: #{downsampling_bottleneck_forward.1} parent=11 // pred_check
          %p346 = pneg %p216
        $region42: #{downsampling_bottleneck_forward.1} parent=11 // pred_check_branch
          %348 = sbr.rel (%p346) target = $region44
        $region43: #{downsampling_bottleneck_forward.1} parent=11 // pred_region
          _
        $region44: #{downsampling_bottleneck_forward.1} parent=11 // pred_fallthru
          _
        // Predicated region
        $region45: #{downsampling_bottleneck_forward.1} parent=11 // pred_check
          %p349 = pneg %p237
        $region46: #{downsampling_bottleneck_forward.1} parent=11 // pred_check_branch
          %351 = sbr.rel (%p349) target = $region48
        $region47: #{downsampling_bottleneck_forward.1} parent=11 // pred_region
          _
        $region48: #{downsampling_bottleneck_forward.1} parent=11 // pred_fallthru
          _
        // Predicated region
        $region49: #{downsampling_bottleneck_forward.1} parent=11 // pred_check
          %p352 = pneg %p258
        $region50: #{downsampling_bottleneck_forward.1} parent=11 // pred_check_branch
          %354 = sbr.rel (%p352) target = $region52
        $region51: #{downsampling_bottleneck_forward.1} parent=11 // pred_region
          _
        $region52: #{downsampling_bottleneck_forward.1} parent=11 // pred_fallthru
          _
      $region12: #{downsampling_bottleneck_forward.1} parent=5 // pred_fallthru
        _
      %p355 = scmp.lt.s32.totalorder %s22, 2
      // Predicated region
      $region53: #{downsampling_bottleneck_forward.1} parent=5 // pred_check
        %p356 = pneg %p355
      $region54: #{downsampling_bottleneck_forward.1} parent=5 // pred_check_branch
        %358 = sbr.rel (%p356) target = $region56
      $region55: #{downsampling_bottleneck_forward.1} parent=5 // pred_region
        // Predicated region
        $region57: #{downsampling_bottleneck_forward.1} parent=55 // pred_check
          %p359 = pneg %p42
        $region58: #{downsampling_bottleneck_forward.1} parent=55 // pred_check_branch
          %361 = sbr.rel (%p359) target = $region60
        $region59: #{downsampling_bottleneck_forward.1} parent=55 // pred_region
          %p362 = scmp.lt.s32.totalorder %s22, 1
          %s363 = scalar_select %p362, %s22, 1
          %s364 = smul.addr %s363, 16
          %s365 = smul.addr %s364, 8
          %s366 = scalar_lea.vmem %s0, %s365
        $region60: #{downsampling_bottleneck_forward.1} parent=55 // pred_fallthru
          _
      $region56: #{downsampling_bottleneck_forward.1} parent=5 // pred_fallthru
        _
      %p367 = scmp.le.s32.totalorder 1, %s22
      %p368 = scmp.lt.s32.totalorder %s22, 3
      %p369 = pnand %p367, %p368
      %p370 = pneg %p369
      // Predicated region
      $region61: #{downsampling_bottleneck_forward.1} parent=5 // pred_check
        _
      $region62: #{downsampling_bottleneck_forward.1} parent=5 // pred_check_branch
        %372 = sbr.rel (%p369) target = $region64
      $region63: #{downsampling_bottleneck_forward.1} parent=5 // pred_region
        %s373 = ssub.s32 %s22, 1
        %p374 = scmp.lt.s32.totalorder %s27, 1
        %s375 = scalar_select %p374, %s27, 1
        %s376 = smul.addr %s375, 16
        %s377 = smul.addr %s376, 8
        %s378 = scalar_lea.vmem %s0, %s377
        %p379 = pneg %p48
        %p380 = pneg %p45
        %p381 = pneg %p69
        %p382 = pneg %p66
        %p383 = pneg %p90
        %p384 = pneg %p87
        %p385 = pneg %p111
        %p386 = pneg %p108
        %p387 = pneg %p132
        %p388 = pneg %p129
        %p389 = pneg %p153
        %p390 = pneg %p150
        %p391 = pneg %p174
        %p392 = pneg %p171
        %p393 = pneg %p195
        %p394 = pneg %p192
        %p395 = pneg %p216
        %p396 = pneg %p213
        %p397 = pneg %p237
        %p398 = pneg %p234
        %p399 = pneg %p258
        %p400 = pneg %p255
        %p401 = pneg %p284
        %p402 = pneg %p281
        %s403 = sand.u32 %s271, 1
        %s404 = scalar_lea.sflag [#allocation4], %s403
        %s405 = sand.u32 %s271, 1
        %s406 = smul.addr %s405, 64
        %s407 = scalar_lea.vmem [#allocation3], %s406
        %p408 = pneg %p310
        %p409 = pneg %p307
        %p410 = scmp.lt.s32.totalorder %s27, 1
        %s411 = scalar_select %p410, %s27, 1
        %s412 = smul.addr %s411, 8
        %s413 = smul.addr %s412, 8
        %s414 = scalar_lea.vmem %s12, %s413
        %p415 = scmp.lt.s32.totalorder %s27, 1
        %s416 = scalar_select %p415, %s27, 1
        %s417 = smul.addr %s416, 16
        %s418 = smul.addr %s417, 8
        %s419 = scalar_lea.vmem %s0, %s418
        %p420 = scmp.lt.s32.totalorder %s27, 1
        %s421 = scalar_select %p420, %s27, 1
        %s422 = smul.addr %s421, 8
        %s423 = smul.addr %s422, 8
        %s424 = scalar_lea.vmem %s12, %s423
        %v426 = vld [vmem:[%s419] sm:$0xff]
        %v427 = vld [vmem:[%s419 + $0x10] sm:$0xff]
        %v428 = vld [vmem:[%s419 + $0x20] sm:$0xff]
        %v429 = vld [vmem:[%s419 + $0x30] sm:$0xff]
        %v430 = vld [vmem:[%s419 + $0x40] sm:$0xff]
        %v431 = vld [vmem:[%s419 + $0x50] sm:$0xff]
        %v432 = vld [vmem:[%s419 + $0x60] sm:$0xff]
        %v433 = vld [vmem:[%s419 + $0x70] sm:$0xff]
        %s434 = scalar_lea.vmem %s419, 8
        %v435 = vld [vmem:[%s434] sm:$0xff]
        %v436 = vld [vmem:[%s434 + $0x10] sm:$0xff]
        %v437 = vld [vmem:[%s434 + $0x20] sm:$0xff]
        %v438 = vld [vmem:[%s434 + $0x30] sm:$0xff]
        %v439 = vld [vmem:[%s434 + $0x40] sm:$0xff]
        %v440 = vld [vmem:[%s434 + $0x50] sm:$0xff]
        %v441 = vld [vmem:[%s434 + $0x60] sm:$0xff]
        %v442 = vld [vmem:[%s434 + $0x70] sm:$0xff]
        %451 = vrot.lane.b32.xlu0 %v435, 16
        %v452 = vpop.permute.xlu0 %451
        %453 = vrot.lane.b32.xlu0 %v436, 16
        %v454 = vpop.permute.xlu0 %453
        %455 = vrot.lane.b32.xlu0 %v437, 16
        %v456 = vpop.permute.xlu0 %455
        %457 = vrot.lane.b32.xlu0 %v438, 16
        %v458 = vpop.permute.xlu0 %457
        %459 = vrot.lane.b32.xlu0 %v439, 16
        %v460 = vpop.permute.xlu0 %459
        %461 = vrot.lane.b32.xlu0 %v440, 16
        %v462 = vpop.permute.xlu0 %461
        %463 = vrot.lane.b32.xlu0 %v441, 16
        %v464 = vpop.permute.xlu0 %463
        %465 = vrot.lane.b32.xlu0 %v442, 16
        %v466 = vpop.permute.xlu0 %465
        %vm475 = vcmask 130048
        %v476 = vsel %vm475, %v426, %v452
        %v477 = vsel %vm475, %v427, %v454
        %v478 = vsel %vm475, %v428, %v456
        %v479 = vsel %vm475, %v429, %v458
        %v480 = vsel %vm475, %v430, %v460
        %v481 = vsel %vm475, %v431, %v462
        %v482 = vsel %vm475, %v432, %v464
        %v483 = vsel %vm475, %v433, %v466
        %v484 = vpack.c.bf16 %v477, %v476
        %v485 = vpack.c.bf16 %v479, %v478
        %v486 = vpack.c.bf16 %v481, %v480
        %v487 = vpack.c.bf16 %v483, %v482
        %v488 = vld [vmem:[%s1] sm:$0xf]
        %v489 = vld [vmem:[%s1 + $0x4] sm:$0xf]
        %v490 = vld [vmem:[%s1 + $0x8] sm:$0xf]
        %v491 = vld [vmem:[%s1 + $0xc] sm:$0xf]
        %v492 = vld [vmem:[%s2] sm:$0x1]
        %v494 = vlaneseq
        %v495 = vshrl.u32 %v494, 7
        %v496 = vsub.s32 0, %v495
        %v497 = vrot.slane %v492, %v496
        %v503 = vunpack.c.l.b16 %v488
        %v504 = vunpack.c.l.b16 %v489
        %v505 = vunpack.c.l.b16 %v490
        %v506 = vunpack.c.l.b16 %v491
        %v507 = vpack.c.b16 %v504, %v503
        %v508 = vpack.c.b16 %v506, %v505
        %vm511 = vcmask 261120
        %v513 = vsel %vm511, %v484, 0
        %v516 = vsel %vm511, %v485, 0
        %v519 = vsel %vm511, %v486, 0
        %v522 = vsel %vm511, %v487, 0
        %524 = vmatprep.subr.bf16.mxu0 0
        %525 = vmatpush1.bf16.msra.mxu0 %v507
        %526 = vmatprep.subr.bf16.mxu0 0
        %527 = vmatpush1.bf16.msra.mxu0 %v508
        %528 = vmatprep.subr.bf16.mxu0 0
        %529 = vmatpush1.bf16.msra.mxu0 0
        %530 = vmatprep.subr.bf16.mxu0 0
        %531 = vmatpush1.bf16.msra.mxu0 0
        %532 = vmatprep.subr.bf16.mxu0 0
        %533 = vmatpush1.bf16.msra.mxu0 0
        %534 = vmatprep.subr.bf16.mxu0 0
        %535 = vmatpush1.bf16.msra.mxu0 0
        %536 = vmatprep.subr.bf16.mxu0 0
        %537 = vmatpush1.bf16.msra.mxu0 0
        %538 = vmatprep.subr.bf16.mxu0 0
        %539 = vmatpush1.bf16.msra.mxu0 0
        %540 = vmatprep.subr.bf16.mxu0 0
        %541 = vmatpush1.bf16.msra.mxu0 0
        %542 = vmatprep.subr.bf16.mxu0 0
        %543 = vmatpush1.bf16.msra.mxu0 0
        %544 = vmatprep.subr.bf16.mxu0 0
        %545 = vmatpush1.bf16.msra.mxu0 0
        %546 = vmatprep.subr.bf16.mxu0 0
        %547 = vmatpush1.bf16.msra.mxu0 0
        %548 = vmatprep.subr.bf16.mxu0 0
        %549 = vmatpush1.bf16.msra.mxu0 0
        %550 = vmatprep.subr.bf16.mxu0 0
        %551 = vmatpush1.bf16.msra.mxu0 0
        %552 = vmatprep.subr.bf16.mxu0 0
        %553 = vmatpush1.bf16.msra.mxu0 0
        %554 = vmatprep.subr.bf16.mxu0 0
        %555 = vmatpush1.bf16.msra.mxu0 0
        %556 = vmatprep.mubr.bf16.mxu0 0
        %557 = vmatmul.mubr.bf16.gmra.mrb[0].mxu0 %v513
        %v558 = vpop.f32.mrb[0].mxu0
        %v559 = vadd.f32 %v497, %v558
        %v560 = vpop.f32.mrb[0].mxu0
        %v561 = vpop.f32.mrb[0].mxu0
        %v562 = vadd.f32 %v497, %v561
        %v563 = vpop.f32.mrb[0].mxu0
        %564 = vmatprep.mubr.bf16.mxu0 0
        %565 = vmatmul.mubr.bf16.gmra.mrb[0].mxu0 %v516
        %v566 = vpop.f32.mrb[0].mxu0
        %v567 = vadd.f32 %v497, %v566
        %v568 = vpop.f32.mrb[0].mxu0
        %v569 = vpop.f32.mrb[0].mxu0
        %v570 = vadd.f32 %v497, %v569
        %v571 = vpop.f32.mrb[0].mxu0
        %572 = vmatprep.mubr.bf16.mxu0 0
        %573 = vmatmul.mubr.bf16.gmra.mrb[0].mxu0 %v519
        %v574 = vpop.f32.mrb[0].mxu0
        %v575 = vadd.f32 %v497, %v574
        %v576 = vpop.f32.mrb[0].mxu0
        %v577 = vpop.f32.mrb[0].mxu0
        %v578 = vadd.f32 %v497, %v577
        %v579 = vpop.f32.mrb[0].mxu0
        %580 = vmatprep.mubr.bf16.mxu0 0
        %581 = vmatmul.mubr.bf16.gmra.mrb[0].mxu0 %v522
        %v582 = vpop.f32.mrb[0].mxu0
        %v583 = vadd.f32 %v497, %v582
        %v584 = vpop.f32.mrb[0].mxu0
        %v585 = vpop.f32.mrb[0].mxu0
        %v586 = vadd.f32 %v497, %v585
        %v587 = vpop.f32.mrb[0].mxu0
        %588 = vdwg.mxu0
        %vm589 = vcmp.ge.f32.partialorder %v559, 0.0
        %vm590 = vcmp.ge.f32.partialorder %v562, 0.0
        %vm591 = vcmp.ge.f32.partialorder %v567, 0.0
        %vm592 = vcmp.ge.f32.partialorder %v570, 0.0
        %vm593 = vcmp.ge.f32.partialorder %v575, 0.0
        %vm594 = vcmp.ge.f32.partialorder %v578, 0.0
        %vm595 = vcmp.ge.f32.partialorder %v583, 0.0
        %vm596 = vcmp.ge.f32.partialorder %v586, 0.0
        %v597 = vld [vmem:[%s3] sm:$0x1]
        %v599 = vlaneseq
        %v600 = vshrl.u32 %v599, 7
        %v601 = vsub.s32 0, %v600
        %v602 = vrot.slane %v597, %v601
        %v604 = vmul.f32 %v602, %v559
        %v605 = vmul.f32 %v602, %v562
        %v606 = vmul.f32 %v602, %v567
        %v607 = vmul.f32 %v602, %v570
        %v608 = vmul.f32 %v602, %v575
        %v609 = vmul.f32 %v602, %v578
        %v610 = vmul.f32 %v602, %v583
        %v611 = vmul.f32 %v602, %v586
        %v612 = vsel %vm589, %v559, %v604
        %v613 = vsel %vm590, %v562, %v605
        %v614 = vsel %vm591, %v567, %v606
        %v615 = vsel %vm592, %v570, %v607
        %v616 = vsel %vm593, %v575, %v608
        %v617 = vsel %vm594, %v578, %v609
        %v618 = vsel %vm595, %v583, %v610
        %v619 = vsel %vm596, %v586, %v611
        %vm620 = vcmask 11264
        %621 = vst.msk [vmem:[#allocation2] sm:$0xf] %vm620, 0
        %vm622 = vcmask 8192
        %623 = vst.msk [vmem:[#allocation2 + $0x4] sm:$0x1] %vm622, 0
        %624 = vst.msk [vmem:[#allocation2 + $0x8] sm:$0xf] %vm620, 0
        %625 = vst.msk [vmem:[#allocation2 + $0xc] sm:$0x1] %vm622, 0
        %626 = vst.msk [vmem:[#allocation2 + $0x10] sm:$0xf] %vm620, 0
        %627 = vst.msk [vmem:[#allocation2 + $0x14] sm:$0x1] %vm622, 0
        %628 = vst.msk [vmem:[#allocation2 + $0x18] sm:$0xf] %vm620, 0
        %629 = vst.msk [vmem:[#allocation2 + $0x1c] sm:$0x1] %vm622, 0
        %630 = vst.msk [vmem:[#allocation2 + $0x20] sm:$0xf] %vm620, 0
        %631 = vst.msk [vmem:[#allocation2 + $0x24] sm:$0x1] %vm622, 0
        %632 = vst.msk [vmem:[#allocation2 + $0x28] sm:$0xf] %vm620, 0
        %633 = vst.msk [vmem:[#allocation2 + $0x2c] sm:$0x1] %vm622, 0
        %634 = vst.msk [vmem:[#allocation2 + $0x30] sm:$0xf] %vm620, 0
        %635 = vst.msk [vmem:[#allocation2 + $0x34] sm:$0x1] %vm622, 0
        %636 = vst.msk [vmem:[#allocation2 + $0x38] sm:$0xf] %vm620, 0
        %637 = vst.msk [vmem:[#allocation2 + $0x3c] sm:$0x1] %vm622, 0
        %638 = vst.msk [vmem:[#allocation2 + $0x40] sm:$0xf] %vm620, 0
        %639 = vst.msk [vmem:[#allocation2 + $0x44] sm:$0x1] %vm622, 0
        %640 = vst.msk [vmem:[#allocation2 + $0x48] sm:$0xf] %vm620, 0
        %641 = vst.msk [vmem:[#allocation2 + $0x4c] sm:$0x1] %vm622, 0
        %v642 = vpack.c.bf16 %v612, %v612
        %v643 = vpack.c.bf16 %v613, %v613
        %v644 = vpack.c.bf16 %v614, %v614
        %v645 = vpack.c.bf16 %v615, %v615
        %v646 = vpack.c.bf16 %v616, %v616
        %v647 = vpack.c.bf16 %v617, %v617
        %v648 = vpack.c.bf16 %v618, %v618
        %v649 = vpack.c.bf16 %v619, %v619
        %v658 = vunpack.c.l.b16 %v642
        %v659 = vunpack.c.l.b16 %v643
        %v660 = vunpack.c.l.b16 %v644
        %v661 = vunpack.c.l.b16 %v645
        %v662 = vunpack.c.l.b16 %v646
        %v663 = vunpack.c.l.b16 %v647
        %v664 = vunpack.c.l.b16 %v648
        %v665 = vunpack.c.l.b16 %v649
        %v666 = vpack.c.b16 %v658, %v658
        %v667 = vpack.c.b16 %v659, %v659
        %v668 = vpack.c.b16 %v660, %v660
        %v669 = vpack.c.b16 %v661, %v661
        %v670 = vpack.c.b16 %v662, %v662
        %v671 = vpack.c.b16 %v663, %v663
        %v672 = vpack.c.b16 %v664, %v664
        %v673 = vpack.c.b16 %v665, %v665
        %v675 = vshrl.u32 %v666, 16
        %v677 = vrot.slane %v675, 7
        %v678 = vshll.u32 %v666, 16
        %v680 = vor.u32 %v677, %v678
        %v681 = vrot.slane %v677, 4
        %v683 = vshrl.u32 %v667, 16
        %v685 = vrot.slane %v683, 7
        %v686 = vshll.u32 %v667, 16
        %v688 = vor.u32 %v685, %v686
        %v689 = vrot.slane %v685, 4
        %v691 = vshrl.u32 %v668, 16
        %v693 = vrot.slane %v691, 7
        %v694 = vshll.u32 %v668, 16
        %v696 = vor.u32 %v693, %v694
        %v697 = vrot.slane %v693, 4
        %v699 = vshrl.u32 %v669, 16
        %v701 = vrot.slane %v699, 7
        %v702 = vshll.u32 %v669, 16
        %v704 = vor.u32 %v701, %v702
        %v705 = vrot.slane %v701, 4
        %v707 = vshrl.u32 %v670, 16
        %v709 = vrot.slane %v707, 7
        %v710 = vshll.u32 %v670, 16
        %v712 = vor.u32 %v709, %v710
        %v713 = vrot.slane %v709, 4
        %v715 = vshrl.u32 %v671, 16
        %v717 = vrot.slane %v715, 7
        %v718 = vshll.u32 %v671, 16
        %v720 = vor.u32 %v717, %v718
        %v721 = vrot.slane %v717, 4
        %v723 = vshrl.u32 %v672, 16
        %v725 = vrot.slane %v723, 7
        %v726 = vshll.u32 %v672, 16
        %v728 = vor.u32 %v725, %v726
        %v729 = vrot.slane %v725, 4
        %v731 = vshrl.u32 %v673, 16
        %v733 = vrot.slane %v731, 7
        %v734 = vshll.u32 %v673, 16
        %v736 = vor.u32 %v733, %v734
        %v737 = vrot.slane %v733, 4
        %s754 = scalar_lea.vmem [#allocation2], 8
        %vm755 = vcmask 11264
        %vm756 = vsmask.f32 7938
        %vm757 = vmand %vm755, %vm756
        %v758 = vld [vmem:[%s754] sm:$0xf]
        %v759 = vsel %vm757, %v680, %v758
        %760 = vst [vmem:[%s754] sm:$0xf] %v759
        %vm761 = vcmask 8192
        %vm762 = vsmask.f32 256
        %vm763 = vmand %vm761, %vm762
        %v764 = vld [vmem:[%s754 + $0x4] sm:$0x1]
        %v765 = vsel %vm763, %v681, %v764
        %766 = vst [vmem:[%s754 + $0x4] sm:$0x1] %v765
        %v767 = vld [vmem:[%s754 + $0x8] sm:$0xf]
        %v768 = vsel %vm757, %v688, %v767
        %769 = vst [vmem:[%s754 + $0x8] sm:$0xf] %v768
        %v770 = vld [vmem:[%s754 + $0xc] sm:$0x1]
        %v771 = vsel %vm763, %v689, %v770
        %772 = vst [vmem:[%s754 + $0xc] sm:$0x1] %v771
        %v773 = vld [vmem:[%s754 + $0x10] sm:$0xf]
        %v774 = vsel %vm757, %v696, %v773
        %775 = vst [vmem:[%s754 + $0x10] sm:$0xf] %v774
        %v776 = vld [vmem:[%s754 + $0x14] sm:$0x1]
        %v777 = vsel %vm763, %v697, %v776
        %778 = vst [vmem:[%s754 + $0x14] sm:$0x1] %v777
        %v779 = vld [vmem:[%s754 + $0x18] sm:$0xf]
        %v780 = vsel %vm757, %v704, %v779
        %781 = vst [vmem:[%s754 + $0x18] sm:$0xf] %v780
        %v782 = vld [vmem:[%s754 + $0x1c] sm:$0x1]
        %v783 = vsel %vm763, %v705, %v782
        %784 = vst [vmem:[%s754 + $0x1c] sm:$0x1] %v783
        %v785 = vld [vmem:[%s754 + $0x20] sm:$0xf]
        %v786 = vsel %vm757, %v712, %v785
        %787 = vst [vmem:[%s754 + $0x20] sm:$0xf] %v786
        %v788 = vld [vmem:[%s754 + $0x24] sm:$0x1]
        %v789 = vsel %vm763, %v713, %v788
        %790 = vst [vmem:[%s754 + $0x24] sm:$0x1] %v789
        %v791 = vld [vmem:[%s754 + $0x28] sm:$0xf]
        %v792 = vsel %vm757, %v720, %v791
        %793 = vst [vmem:[%s754 + $0x28] sm:$0xf] %v792
        %v794 = vld [vmem:[%s754 + $0x2c] sm:$0x1]
        %v795 = vsel %vm763, %v721, %v794
        %796 = vst [vmem:[%s754 + $0x2c] sm:$0x1] %v795
        %v797 = vld [vmem:[%s754 + $0x30] sm:$0xf]
        %v798 = vsel %vm757, %v728, %v797
        %799 = vst [vmem:[%s754 + $0x30] sm:$0xf] %v798
        %v800 = vld [vmem:[%s754 + $0x34] sm:$0x1]
        %v801 = vsel %vm763, %v729, %v800
        %802 = vst [vmem:[%s754 + $0x34] sm:$0x1] %v801
        %v803 = vld [vmem:[%s754 + $0x38] sm:$0xf]
        %v804 = vsel %vm757, %v736, %v803
        %805 = vst [vmem:[%s754 + $0x38] sm:$0xf] %v804
        %v806 = vld [vmem:[%s754 + $0x3c] sm:$0x1]
        %v807 = vsel %vm763, %v737, %v806
        %808 = vst [vmem:[%s754 + $0x3c] sm:$0x1] %v807
        %v809 = vld [vmem:[#allocation2] sm:$0xf]
        %v810 = vld [vmem:[#allocation2 + $0x8] sm:$0xf]
        %v811 = vld [vmem:[#allocation2 + $0x10] sm:$0xf]
        %v812 = vld [vmem:[#allocation2 + $0x18] sm:$0xf]
        %v813 = vld [vmem:[#allocation2 + $0x20] sm:$0xf]
        %v814 = vld [vmem:[#allocation2 + $0x28] sm:$0xf]
        %v815 = vld [vmem:[#allocation2 + $0x30] sm:$0xf]
        %v816 = vld [vmem:[#allocation2 + $0x38] sm:$0xf]
        %v817 = vld [vmem:[#allocation2 + $0x4] sm:$0x1]
        %v818 = vld [vmem:[#allocation2 + $0xc] sm:$0x1]
        %v819 = vld [vmem:[#allocation2 + $0x14] sm:$0x1]
        %v820 = vld [vmem:[#allocation2 + $0x1c] sm:$0x1]
        %v821 = vld [vmem:[#allocation2 + $0x24] sm:$0x1]
        %v822 = vld [vmem:[#allocation2 + $0x2c] sm:$0x1]
        %v823 = vld [vmem:[#allocation2 + $0x34] sm:$0x1]
        %v824 = vld [vmem:[#allocation2 + $0x3c] sm:$0x1]
        %vm825 = vsmask.f32 3328
        %vm826 = vsmask.f32 7440
        %vm827 = vmor %vm825, %vm826
        %v829 = vshrl.u32 %v809, 16
        %v831 = vrot.slane %v829, 4
        %v832 = vshll.u32 %v809, 16
        %v834 = vrot.slane %v832, 5
        %v835 = vor.u32 %v831, %v834
        %v836 = vrot.slane %v835, 4
        %v838 = vshll.u32 %v817, 16
        %v840 = vrot.slane %v838, 5
        %v841 = vsel %vm827, %v836, %v840
        %v843 = vshrl.u32 %v810, 16
        %v845 = vrot.slane %v843, 4
        %v846 = vshll.u32 %v810, 16
        %v848 = vrot.slane %v846, 5
        %v849 = vor.u32 %v845, %v848
        %v850 = vrot.slane %v849, 4
        %v852 = vshll.u32 %v818, 16
        %v854 = vrot.slane %v852, 5
        %v855 = vsel %vm827, %v850, %v854
        %v857 = vshrl.u32 %v811, 16
        %v859 = vrot.slane %v857, 4
        %v860 = vshll.u32 %v811, 16
        %v862 = vrot.slane %v860, 5
        %v863 = vor.u32 %v859, %v862
        %v864 = vrot.slane %v863, 4
        %v866 = vshll.u32 %v819, 16
        %v868 = vrot.slane %v866, 5
        %v869 = vsel %vm827, %v864, %v868
        %v871 = vshrl.u32 %v812, 16
        %v873 = vrot.slane %v871, 4
        %v874 = vshll.u32 %v812, 16
        %v876 = vrot.slane %v874, 5
        %v877 = vor.u32 %v873, %v876
        %v878 = vrot.slane %v877, 4
        %v880 = vshll.u32 %v820, 16
        %v882 = vrot.slane %v880, 5
        %v883 = vsel %vm827, %v878, %v882
        %v885 = vshrl.u32 %v813, 16
        %v887 = vrot.slane %v885, 4
        %v888 = vshll.u32 %v813, 16
        %v890 = vrot.slane %v888, 5
        %v891 = vor.u32 %v887, %v890
        %v892 = vrot.slane %v891, 4
        %v894 = vshll.u32 %v821, 16
        %v896 = vrot.slane %v894, 5
        %v897 = vsel %vm827, %v892, %v896
        %v899 = vshrl.u32 %v814, 16
        %v901 = vrot.slane %v899, 4
        %v902 = vshll.u32 %v814, 16
        %v904 = vrot.slane %v902, 5
        %v905 = vor.u32 %v901, %v904
        %v906 = vrot.slane %v905, 4
        %v908 = vshll.u32 %v822, 16
        %v910 = vrot.slane %v908, 5
        %v911 = vsel %vm827, %v906, %v910
        %v913 = vshrl.u32 %v815, 16
        %v915 = vrot.slane %v913, 4
        %v916 = vshll.u32 %v815, 16
        %v918 = vrot.slane %v916, 5
        %v919 = vor.u32 %v915, %v918
        %v920 = vrot.slane %v919, 4
        %v922 = vshll.u32 %v823, 16
        %v924 = vrot.slane %v922, 5
        %v925 = vsel %vm827, %v920, %v924
        %v927 = vshrl.u32 %v816, 16
        %v929 = vrot.slane %v927, 4
        %v930 = vshll.u32 %v816, 16
        %v932 = vrot.slane %v930, 5
        %v933 = vor.u32 %v929, %v932
        %v934 = vrot.slane %v933, 4
        %v936 = vshll.u32 %v824, 16
        %v938 = vrot.slane %v936, 5
        %v939 = vsel %vm827, %v934, %v938
        %v940 = vld [vmem:[#allocation2] sm:$0xe]
        %v941 = vld [vmem:[#allocation2 + $0x8] sm:$0xe]
        %v942 = vld [vmem:[#allocation2 + $0x10] sm:$0xe]
        %v943 = vld [vmem:[#allocation2 + $0x18] sm:$0xe]
        %v944 = vld [vmem:[#allocation2 + $0x20] sm:$0xe]
        %v945 = vld [vmem:[#allocation2 + $0x28] sm:$0xe]
        %v946 = vld [vmem:[#allocation2 + $0x30] sm:$0xe]
        %v947 = vld [vmem:[#allocation2 + $0x38] sm:$0xe]
        %vm964 = vcmask 1042432
        %vm965 = vcmask 1046532
        %vm966 = vmor %vm964, %vm965
        %v967 = vrot.slane %v940, 5
        %v968 = vrot.slane %v967, 4
        %v969 = vrot.slane %v817, 5
        %v970 = vsel %vm966, %v968, %v969
        %v971 = vrot.slane %v941, 5
        %v972 = vrot.slane %v971, 4
        %v973 = vrot.slane %v818, 5
        %v974 = vsel %vm966, %v972, %v973
        %v975 = vrot.slane %v942, 5
        %v976 = vrot.slane %v975, 4
        %v977 = vrot.slane %v819, 5
        %v978 = vsel %vm966, %v976, %v977
        %v979 = vrot.slane %v943, 5
        %v980 = vrot.slane %v979, 4
        %v981 = vrot.slane %v820, 5
        %v982 = vsel %vm966, %v980, %v981
        %v983 = vrot.slane %v944, 5
        %v984 = vrot.slane %v983, 4
        %v985 = vrot.slane %v821, 5
        %v986 = vsel %vm966, %v984, %v985
        %v987 = vrot.slane %v945, 5
        %v988 = vrot.slane %v987, 4
        %v989 = vrot.slane %v822, 5
        %v990 = vsel %vm966, %v988, %v989
        %v991 = vrot.slane %v946, 5
        %v992 = vrot.slane %v991, 4
        %v993 = vrot.slane %v823, 5
        %v994 = vsel %vm966, %v992, %v993
        %v995 = vrot.slane %v947, 5
        %v996 = vrot.slane %v995, 4
        %v997 = vrot.slane %v824, 5
        %v998 = vsel %vm966, %v996, %v997
        %v999 = vld [vmem:[%s754] sm:$0xf]
        %v1000 = vld [vmem:[%s754 + $0x8] sm:$0xf]
        %v1001 = vld [vmem:[%s754 + $0x10] sm:$0xf]
        %v1002 = vld [vmem:[%s754 + $0x18] sm:$0xf]
        %v1003 = vld [vmem:[%s754 + $0x20] sm:$0xf]
        %v1004 = vld [vmem:[%s754 + $0x28] sm:$0xf]
        %v1005 = vld [vmem:[%s754 + $0x30] sm:$0xf]
        %v1006 = vld [vmem:[%s754 + $0x38] sm:$0xf]
        %v1007 = vld [vmem:[%s754 + $0x4] sm:$0x1]
        %v1008 = vld [vmem:[%s754 + $0xc] sm:$0x1]
        %v1009 = vld [vmem:[%s754 + $0x14] sm:$0x1]
        %v1010 = vld [vmem:[%s754 + $0x1c] sm:$0x1]
        %v1011 = vld [vmem:[%s754 + $0x24] sm:$0x1]
        %v1012 = vld [vmem:[%s754 + $0x2c] sm:$0x1]
        %v1013 = vld [vmem:[%s754 + $0x34] sm:$0x1]
        %v1014 = vld [vmem:[%s754 + $0x3c] sm:$0x1]
        %v1016 = vshrl.u32 %v999, 16
        %v1018 = vrot.slane %v1016, 4
        %v1019 = vshll.u32 %v999, 16
        %v1021 = vrot.slane %v1019, 5
        %v1022 = vor.u32 %v1018, %v1021
        %v1023 = vrot.slane %v1022, 4
        %v1025 = vshll.u32 %v1007, 16
        %v1027 = vrot.slane %v1025, 5
        %v1028 = vsel %vm827, %v1023, %v1027
        %v1030 = vshrl.u32 %v1000, 16
        %v1032 = vrot.slane %v1030, 4
        %v1033 = vshll.u32 %v1000, 16
        %v1035 = vrot.slane %v1033, 5
        %v1036 = vor.u32 %v1032, %v1035
        %v1037 = vrot.slane %v1036, 4
        %v1039 = vshll.u32 %v1008, 16
        %v1041 = vrot.slane %v1039, 5
        %v1042 = vsel %vm827, %v1037, %v1041
        %v1044 = vshrl.u32 %v1001, 16
        %v1046 = vrot.slane %v1044, 4
        %v1047 = vshll.u32 %v1001, 16
        %v1049 = vrot.slane %v1047, 5
        %v1050 = vor.u32 %v1046, %v1049
        %v1051 = vrot.slane %v1050, 4
        %v1053 = vshll.u32 %v1009, 16
        %v1055 = vrot.slane %v1053, 5
        %v1056 = vsel %vm827, %v1051, %v1055
        %v1058 = vshrl.u32 %v1002, 16
        %v1060 = vrot.slane %v1058, 4
        %v1061 = vshll.u32 %v1002, 16
        %v1063 = vrot.slane %v1061, 5
        %v1064 = vor.u32 %v1060, %v1063
        %v1065 = vrot.slane %v1064, 4
        %v1067 = vshll.u32 %v1010, 16
        %v1069 = vrot.slane %v1067, 5
        %v1070 = vsel %vm827, %v1065, %v1069
        %v1072 = vshrl.u32 %v1003, 16
        %v1074 = vrot.slane %v1072, 4
        %v1075 = vshll.u32 %v1003, 16
        %v1077 = vrot.slane %v1075, 5
        %v1078 = vor.u32 %v1074, %v1077
        %v1079 = vrot.slane %v1078, 4
        %v1081 = vshll.u32 %v1011, 16
        %v1083 = vrot.slane %v1081, 5
        %v1084 = vsel %vm827, %v1079, %v1083
        %v1086 = vshrl.u32 %v1004, 16
        %v1088 = vrot.slane %v1086, 4
        %v1089 = vshll.u32 %v1004, 16
        %v1091 = vrot.slane %v1089, 5
        %v1092 = vor.u32 %v1088, %v1091
        %v1093 = vrot.slane %v1092, 4
        %v1095 = vshll.u32 %v1012, 16
        %v1097 = vrot.slane %v1095, 5
        %v1098 = vsel %vm827, %v1093, %v1097
        %v1100 = vshrl.u32 %v1005, 16
        %v1102 = vrot.slane %v1100, 4
        %v1103 = vshll.u32 %v1005, 16
        %v1105 = vrot.slane %v1103, 5
        %v1106 = vor.u32 %v1102, %v1105
        %v1107 = vrot.slane %v1106, 4
        %v1109 = vshll.u32 %v1013, 16
        %v1111 = vrot.slane %v1109, 5
        %v1112 = vsel %vm827, %v1107, %v1111
        %v1114 = vshrl.u32 %v1006, 16
        %v1116 = vrot.slane %v1114, 4
        %v1117 = vshll.u32 %v1006, 16
        %v1119 = vrot.slane %v1117, 5
        %v1120 = vor.u32 %v1116, %v1119
        %v1121 = vrot.slane %v1120, 4
        %v1123 = vshll.u32 %v1014, 16
        %v1125 = vrot.slane %v1123, 5
        %v1126 = vsel %vm827, %v1121, %v1125
        %v1127 = vld [vmem:[%s754] sm:$0xe]
        %v1128 = vld [vmem:[%s754 + $0x8] sm:$0xe]
        %v1129 = vld [vmem:[%s754 + $0x10] sm:$0xe]
        %v1130 = vld [vmem:[%s754 + $0x18] sm:$0xe]
        %v1131 = vld [vmem:[%s754 + $0x20] sm:$0xe]
        %v1132 = vld [vmem:[%s754 + $0x28] sm:$0xe]
        %v1133 = vld [vmem:[%s754 + $0x30] sm:$0xe]
        %v1134 = vld [vmem:[%s754 + $0x38] sm:$0xe]
        %v1151 = vrot.slane %v1127, 5
        %v1152 = vrot.slane %v1151, 4
        %v1153 = vrot.slane %v1007, 5
        %v1154 = vsel %vm966, %v1152, %v1153
        %v1155 = vrot.slane %v1128, 5
        %v1156 = vrot.slane %v1155, 4
        %v1157 = vrot.slane %v1008, 5
        %v1158 = vsel %vm966, %v1156, %v1157
        %v1159 = vrot.slane %v1129, 5
        %v1160 = vrot.slane %v1159, 4
        %v1161 = vrot.slane %v1009, 5
        %v1162 = vsel %vm966, %v1160, %v1161
        %v1163 = vrot.slane %v1130, 5
        %v1164 = vrot.slane %v1163, 4
        %v1165 = vrot.slane %v1010, 5
        %v1166 = vsel %vm966, %v1164, %v1165
        %v1167 = vrot.slane %v1131, 5
        %v1168 = vrot.slane %v1167, 4
        %v1169 = vrot.slane %v1011, 5
        %v1170 = vsel %vm966, %v1168, %v1169
        %v1171 = vrot.slane %v1132, 5
        %v1172 = vrot.slane %v1171, 4
        %v1173 = vrot.slane %v1012, 5
        %v1174 = vsel %vm966, %v1172, %v1173
        %v1175 = vrot.slane %v1133, 5
        %v1176 = vrot.slane %v1175, 4
        %v1177 = vrot.slane %v1013, 5
        %v1178 = vsel %vm966, %v1176, %v1177
        %v1179 = vrot.slane %v1134, 5
        %v1180 = vrot.slane %v1179, 4
        %v1181 = vrot.slane %v1014, 5
        %v1182 = vsel %vm966, %v1180, %v1181
        %s1183 = scalar_lea.vmem [#allocation2], 16
        %v1184 = vld [vmem:[%s1183] sm:$0xf]
        %v1185 = vld [vmem:[%s1183 + $0x8] sm:$0xf]
        %v1186 = vld [vmem:[%s1183 + $0x10] sm:$0xf]
        %v1187 = vld [vmem:[%s1183 + $0x18] sm:$0xf]
        %v1188 = vld [vmem:[%s1183 + $0x20] sm:$0xf]
        %v1189 = vld [vmem:[%s1183 + $0x28] sm:$0xf]
        %v1190 = vld [vmem:[%s1183 + $0x30] sm:$0xf]
        %v1191 = vld [vmem:[%s1183 + $0x38] sm:$0xf]
        %v1192 = vld [vmem:[%s1183 + $0x4] sm:$0x1]
        %v1193 = vld [vmem:[%s1183 + $0xc] sm:$0x1]
        %v1194 = vld [vmem:[%s1183 + $0x14] sm:$0x1]
        %v1195 = vld [vmem:[%s1183 + $0x1c] sm:$0x1]
        %v1196 = vld [vmem:[%s1183 + $0x24] sm:$0x1]
        %v1197 = vld [vmem:[%s1183 + $0x2c] sm:$0x1]
        %v1198 = vld [vmem:[%s1183 + $0x34] sm:$0x1]
        %v1199 = vld [vmem:[%s1183 + $0x3c] sm:$0x1]
        %v1201 = vshrl.u32 %v1184, 16
        %v1203 = vrot.slane %v1201, 4
        %v1204 = vshll.u32 %v1184, 16
        %v1206 = vrot.slane %v1204, 5
        %v1207 = vor.u32 %v1203, %v1206
        %v1208 = vrot.slane %v1207, 4
        %v1210 = vshll.u32 %v1192, 16
        %v1212 = vrot.slane %v1210, 5
        %v1213 = vsel %vm827, %v1208, %v1212
        %v1215 = vshrl.u32 %v1185, 16
        %v1217 = vrot.slane %v1215, 4
        %v1218 = vshll.u32 %v1185, 16
        %v1220 = vrot.slane %v1218, 5
        %v1221 = vor.u32 %v1217, %v1220
        %v1222 = vrot.slane %v1221, 4
        %v1224 = vshll.u32 %v1193, 16
        %v1226 = vrot.slane %v1224, 5
        %v1227 = vsel %vm827, %v1222, %v1226
        %v1229 = vshrl.u32 %v1186, 16
        %v1231 = vrot.slane %v1229, 4
        %v1232 = vshll.u32 %v1186, 16
        %v1234 = vrot.slane %v1232, 5
        %v1235 = vor.u32 %v1231, %v1234
        %v1236 = vrot.slane %v1235, 4
        %v1238 = vshll.u32 %v1194, 16
        %v1240 = vrot.slane %v1238, 5
        %v1241 = vsel %vm827, %v1236, %v1240
        %v1243 = vshrl.u32 %v1187, 16
        %v1245 = vrot.slane %v1243, 4
        %v1246 = vshll.u32 %v1187, 16
        %v1248 = vrot.slane %v1246, 5
        %v1249 = vor.u32 %v1245, %v1248
        %v1250 = vrot.slane %v1249, 4
        %v1252 = vshll.u32 %v1195, 16
        %v1254 = vrot.slane %v1252, 5
        %v1255 = vsel %vm827, %v1250, %v1254
        %v1257 = vshrl.u32 %v1188, 16
        %v1259 = vrot.slane %v1257, 4
        %v1260 = vshll.u32 %v1188, 16
        %v1262 = vrot.slane %v1260, 5
        %v1263 = vor.u32 %v1259, %v1262
        %v1264 = vrot.slane %v1263, 4
        %v1266 = vshll.u32 %v1196, 16
        %v1268 = vrot.slane %v1266, 5
        %v1269 = vsel %vm827, %v1264, %v1268
        %v1271 = vshrl.u32 %v1189, 16
        %v1273 = vrot.slane %v1271, 4
        %v1274 = vshll.u32 %v1189, 16
        %v1276 = vrot.slane %v1274, 5
        %v1277 = vor.u32 %v1273, %v1276
        %v1278 = vrot.slane %v1277, 4
        %v1280 = vshll.u32 %v1197, 16
        %v1282 = vrot.slane %v1280, 5
        %v1283 = vsel %vm827, %v1278, %v1282
        %v1285 = vshrl.u32 %v1190, 16
        %v1287 = vrot.slane %v1285, 4
        %v1288 = vshll.u32 %v1190, 16
        %v1290 = vrot.slane %v1288, 5
        %v1291 = vor.u32 %v1287, %v1290
        %v1292 = vrot.slane %v1291, 4
        %v1294 = vshll.u32 %v1198, 16
        %v1296 = vrot.slane %v1294, 5
        %v1297 = vsel %vm827, %v1292, %v1296
        %v1299 = vshrl.u32 %v1191, 16
        %v1301 = vrot.slane %v1299, 4
        %v1302 = vshll.u32 %v1191, 16
        %v1304 = vrot.slane %v1302, 5
        %v1305 = vor.u32 %v1301, %v1304
        %v1306 = vrot.slane %v1305, 4
        %v1308 = vshll.u32 %v1199, 16
        %v1310 = vrot.slane %v1308, 5
        %v1311 = vsel %vm827, %v1306, %v1310
        %v1312 = vld [vmem:[%s1183] sm:$0xe]
        %v1313 = vld [vmem:[%s1183 + $0x8] sm:$0xe]
        %v1314 = vld [vmem:[%s1183 + $0x10] sm:$0xe]
        %v1315 = vld [vmem:[%s1183 + $0x18] sm:$0xe]
        %v1316 = vld [vmem:[%s1183 + $0x20] sm:$0xe]
        %v1317 = vld [vmem:[%s1183 + $0x28] sm:$0xe]
        %v1318 = vld [vmem:[%s1183 + $0x30] sm:$0xe]
        %v1319 = vld [vmem:[%s1183 + $0x38] sm:$0xe]
        %v1336 = vrot.slane %v1312, 5
        %v1337 = vrot.slane %v1336, 4
        %v1338 = vrot.slane %v1192, 5
        %v1339 = vsel %vm966, %v1337, %v1338
        %v1340 = vrot.slane %v1313, 5
        %v1341 = vrot.slane %v1340, 4
        %v1342 = vrot.slane %v1193, 5
        %v1343 = vsel %vm966, %v1341, %v1342
        %v1344 = vrot.slane %v1314, 5
        %v1345 = vrot.slane %v1344, 4
        %v1346 = vrot.slane %v1194, 5
        %v1347 = vsel %vm966, %v1345, %v1346
        %v1348 = vrot.slane %v1315, 5
        %v1349 = vrot.slane %v1348, 4
        %v1350 = vrot.slane %v1195, 5
        %v1351 = vsel %vm966, %v1349, %v1350
        %v1352 = vrot.slane %v1316, 5
        %v1353 = vrot.slane %v1352, 4
        %v1354 = vrot.slane %v1196, 5
        %v1355 = vsel %vm966, %v1353, %v1354
        %v1356 = vrot.slane %v1317, 5
        %v1357 = vrot.slane %v1356, 4
        %v1358 = vrot.slane %v1197, 5
        %v1359 = vsel %vm966, %v1357, %v1358
        %v1360 = vrot.slane %v1318, 5
        %v1361 = vrot.slane %v1360, 4
        %v1362 = vrot.slane %v1198, 5
        %v1363 = vsel %vm966, %v1361, %v1362
        %v1364 = vrot.slane %v1319, 5
        %v1365 = vrot.slane %v1364, 4
        %v1366 = vrot.slane %v1199, 5
        %v1367 = vsel %vm966, %v1365, %v1366
        %v1376 = vunpack.c.l.b16 %v809
        %v1377 = vunpack.c.l.b16 %v810
        %v1378 = vunpack.c.l.b16 %v811
        %v1379 = vunpack.c.l.b16 %v812
        %v1380 = vunpack.c.l.b16 %v813
        %v1381 = vunpack.c.l.b16 %v814
        %v1382 = vunpack.c.l.b16 %v815
        %v1383 = vunpack.c.l.b16 %v816
        %v1384 = vpack.c.b16 %v1377, %v1376
        %v1385 = vpack.c.b16 %v1379, %v1378
        %v1386 = vpack.c.b16 %v1381, %v1380
        %v1387 = vpack.c.b16 %v1383, %v1382
        %v1388 = vunpack.c.l.b16 %v841
        %v1389 = vunpack.c.l.b16 %v855
        %v1390 = vunpack.c.l.b16 %v869
        %v1391 = vunpack.c.l.b16 %v883
        %v1392 = vunpack.c.l.b16 %v897
        %v1393 = vunpack.c.l.b16 %v911
        %v1394 = vunpack.c.l.b16 %v925
        %v1395 = vunpack.c.l.b16 %v939
        %v1396 = vpack.c.b16 %v1389, %v1388
        %v1397 = vpack.c.b16 %v1391, %v1390
        %v1398 = vpack.c.b16 %v1393, %v1392
        %v1399 = vpack.c.b16 %v1395, %v1394
        %1400 = vrot.lane.b32.xlu0 %v1396, 2
        %v1401 = vpop.permute.xlu0 %1400
        %1402 = vrot.lane.b32.xlu0 %v1397, 2
        %v1403 = vpop.permute.xlu0 %1402
        %1404 = vrot.lane.b32.xlu0 %v1398, 2
        %v1405 = vpop.permute.xlu0 %1404
        %1406 = vrot.lane.b32.xlu0 %v1399, 2
        %v1407 = vpop.permute.xlu0 %1406
        %v1408 = vunpack.c.l.b16 %v970
        %v1409 = vunpack.c.l.b16 %v974
        %v1410 = vunpack.c.l.b16 %v978
        %v1411 = vunpack.c.l.b16 %v982
        %v1412 = vunpack.c.l.b16 %v986
        %v1413 = vunpack.c.l.b16 %v990
        %v1414 = vunpack.c.l.b16 %v994
        %v1415 = vunpack.c.l.b16 %v998
        %v1416 = vpack.c.b16 %v1409, %v1408
        %v1417 = vpack.c.b16 %v1411, %v1410
        %v1418 = vpack.c.b16 %v1413, %v1412
        %v1419 = vpack.c.b16 %v1415, %v1414
        %1420 = vrot.lane.b32.xlu0 %v1416, 4
        %v1421 = vpop.permute.xlu0 %1420
        %1422 = vrot.lane.b32.xlu0 %v1417, 4
        %v1423 = vpop.permute.xlu0 %1422
        %1424 = vrot.lane.b32.xlu0 %v1418, 4
        %v1425 = vpop.permute.xlu0 %1424
        %1426 = vrot.lane.b32.xlu0 %v1419, 4
        %v1427 = vpop.permute.xlu0 %1426
        %v1436 = vunpack.c.l.b16 %v999
        %v1437 = vunpack.c.l.b16 %v1000
        %v1438 = vunpack.c.l.b16 %v1001
        %v1439 = vunpack.c.l.b16 %v1002
        %v1440 = vunpack.c.l.b16 %v1003
        %v1441 = vunpack.c.l.b16 %v1004
        %v1442 = vunpack.c.l.b16 %v1005
        %v1443 = vunpack.c.l.b16 %v1006
        %v1444 = vpack.c.b16 %v1437, %v1436
        %v1445 = vpack.c.b16 %v1439, %v1438
        %v1446 = vpack.c.b16 %v1441, %v1440
        %v1447 = vpack.c.b16 %v1443, %v1442
        %1448 = vrot.lane.b32.xlu0 %v1444, 6
        %v1449 = vpop.permute.xlu0 %1448
        %1450 = vrot.lane.b32.xlu0 %v1445, 6
        %v1451 = vpop.permute.xlu0 %1450
        %1452 = vrot.lane.b32.xlu0 %v1446, 6
        %v1453 = vpop.permute.xlu0 %1452
        %1454 = vrot.lane.b32.xlu0 %v1447, 6
        %v1455 = vpop.permute.xlu0 %1454
        %v1456 = vunpack.c.l.b16 %v1028
        %v1457 = vunpack.c.l.b16 %v1042
        %v1458 = vunpack.c.l.b16 %v1056
        %v1459 = vunpack.c.l.b16 %v1070
        %v1460 = vunpack.c.l.b16 %v1084
        %v1461 = vunpack.c.l.b16 %v1098
        %v1462 = vunpack.c.l.b16 %v1112
        %v1463 = vunpack.c.l.b16 %v1126
        %v1464 = vpack.c.b16 %v1457, %v1456
        %v1465 = vpack.c.b16 %v1459, %v1458
        %v1466 = vpack.c.b16 %v1461, %v1460
        %v1467 = vpack.c.b16 %v1463, %v1462
        %1468 = vrot.lane.b32.xlu0 %v1464, 8
        %v1469 = vpop.permute.xlu0 %1468
        %1470 = vrot.lane.b32.xlu0 %v1465, 8
        %v1471 = vpop.permute.xlu0 %1470
        %1472 = vrot.lane.b32.xlu0 %v1466, 8
        %v1473 = vpop.permute.xlu0 %1472
        %1474 = vrot.lane.b32.xlu0 %v1467, 8
        %v1475 = vpop.permute.xlu0 %1474
        %v1476 = vunpack.c.l.b16 %v1154
        %v1477 = vunpack.c.l.b16 %v1158
        %v1478 = vunpack.c.l.b16 %v1162
        %v1479 = vunpack.c.l.b16 %v1166
        %v1480 = vunpack.c.l.b16 %v1170
        %v1481 = vunpack.c.l.b16 %v1174
        %v1482 = vunpack.c.l.b16 %v1178
        %v1483 = vunpack.c.l.b16 %v1182
        %v1484 = vpack.c.b16 %v1477, %v1476
        %v1485 = vpack.c.b16 %v1479, %v1478
        %v1486 = vpack.c.b16 %v1481, %v1480
        %v1487 = vpack.c.b16 %v1483, %v1482
        %1488 = vrot.lane.b32.xlu0 %v1484, 10
        %v1489 = vpop.permute.xlu0 %1488
        %1490 = vrot.lane.b32.xlu0 %v1485, 10
        %v1491 = vpop.permute.xlu0 %1490
        %1492 = vrot.lane.b32.xlu0 %v1486, 10
        %v1493 = vpop.permute.xlu0 %1492
        %1494 = vrot.lane.b32.xlu0 %v1487, 10
        %v1495 = vpop.permute.xlu0 %1494
        %v1504 = vunpack.c.l.b16 %v1184
        %v1505 = vunpack.c.l.b16 %v1185
        %v1506 = vunpack.c.l.b16 %v1186
        %v1507 = vunpack.c.l.b16 %v1187
        %v1508 = vunpack.c.l.b16 %v1188
        %v1509 = vunpack.c.l.b16 %v1189
        %v1510 = vunpack.c.l.b16 %v1190
        %v1511 = vunpack.c.l.b16 %v1191
        %v1512 = vpack.c.b16 %v1505, %v1504
        %v1513 = vpack.c.b16 %v1507, %v1506
        %v1514 = vpack.c.b16 %v1509, %v1508
        %v1515 = vpack.c.b16 %v1511, %v1510
        %1516 = vrot.lane.b32.xlu0 %v1512, 12
        %v1517 = vpop.permute.xlu0 %1516
        %1518 = vrot.lane.b32.xlu0 %v1513, 12
        %v1519 = vpop.permute.xlu0 %1518
        %1520 = vrot.lane.b32.xlu0 %v1514, 12
        %v1521 = vpop.permute.xlu0 %1520
        %1522 = vrot.lane.b32.xlu0 %v1515, 12
        %v1523 = vpop.permute.xlu0 %1522
        %v1524 = vunpack.c.l.b16 %v1213
        %v1525 = vunpack.c.l.b16 %v1227
        %v1526 = vunpack.c.l.b16 %v1241
        %v1527 = vunpack.c.l.b16 %v1255
        %v1528 = vunpack.c.l.b16 %v1269
        %v1529 = vunpack.c.l.b16 %v1283
        %v1530 = vunpack.c.l.b16 %v1297
        %v1531 = vunpack.c.l.b16 %v1311
        %v1532 = vpack.c.b16 %v1525, %v1524
        %v1533 = vpack.c.b16 %v1527, %v1526
        %v1534 = vpack.c.b16 %v1529, %v1528
        %v1535 = vpack.c.b16 %v1531, %v1530
        %1536 = vrot.lane.b32.xlu0 %v1532, 14
        %v1537 = vpop.permute.xlu0 %1536
        %1538 = vrot.lane.b32.xlu0 %v1533, 14
        %v1539 = vpop.permute.xlu0 %1538
        %1540 = vrot.lane.b32.xlu0 %v1534, 14
        %v1541 = vpop.permute.xlu0 %1540
        %1542 = vrot.lane.b32.xlu0 %v1535, 14
        %v1543 = vpop.permute.xlu0 %1542
        %v1544 = vunpack.c.l.b16 %v1339
        %v1545 = vunpack.c.l.b16 %v1343
        %v1546 = vunpack.c.l.b16 %v1347
        %v1547 = vunpack.c.l.b16 %v1351
        %v1548 = vunpack.c.l.b16 %v1355
        %v1549 = vunpack.c.l.b16 %v1359
        %v1550 = vunpack.c.l.b16 %v1363
        %v1551 = vunpack.c.l.b16 %v1367
        %v1552 = vpack.c.b16 %v1545, %v1544
        %v1553 = vpack.c.b16 %v1547, %v1546
        %v1554 = vpack.c.b16 %v1549, %v1548
        %v1555 = vpack.c.b16 %v1551, %v1550
        %1556 = vrot.lane.b32.xlu0 %v1552, 16
        %v1557 = vpop.permute.xlu0 %1556
        %1558 = vrot.lane.b32.xlu0 %v1553, 16
        %v1559 = vpop.permute.xlu0 %1558
        %1560 = vrot.lane.b32.xlu0 %v1554, 16
        %v1561 = vpop.permute.xlu0 %1560
        %1562 = vrot.lane.b32.xlu0 %v1555, 16
        %v1563 = vpop.permute.xlu0 %1562
        %vm1564 = vcmask 15360
        %v1567 = vsel %vm1564, %v1384, %v1401
        %v1570 = vsel %vm1564, %v1385, %v1403
        %v1573 = vsel %vm1564, %v1386, %v1405
        %v1576 = vsel %vm1564, %v1387, %v1407
        %vm1577 = vcmask 31744
        %v1579 = vsel %vm1577, %v1567, %v1421
        %v1581 = vsel %vm1577, %v1570, %v1423
        %v1583 = vsel %vm1577, %v1573, %v1425
        %v1585 = vsel %vm1577, %v1576, %v1427
        %vm1586 = vcmask 48128
        %v1588 = vsel %vm1586, %v1579, %v1449
        %v1590 = vsel %vm1586, %v1581, %v1451
        %v1592 = vsel %vm1586, %v1583, %v1453
        %v1594 = vsel %vm1586, %v1585, %v1455
        %vm1595 = vcmask 64512
        %v1597 = vsel %vm1595, %v1588, %v1469
        %v1599 = vsel %vm1595, %v1590, %v1471
        %v1601 = vsel %vm1595, %v1592, %v1473
        %v1603 = vsel %vm1595, %v1594, %v1475
        %vm1604 = vcmask 80896
        %v1606 = vsel %vm1604, %v1597, %v1489
        %v1608 = vsel %vm1604, %v1599, %v1491
        %v1610 = vsel %vm1604, %v1601, %v1493
        %v1612 = vsel %vm1604, %v1603, %v1495
        %vm1613 = vcmask 97280
        %v1615 = vsel %vm1613, %v1606, %v1517
        %v1617 = vsel %vm1613, %v1608, %v1519
        %v1619 = vsel %vm1613, %v1610, %v1521
        %v1621 = vsel %vm1613, %v1612, %v1523
        %vm1622 = vcmask 113664
        %v1624 = vsel %vm1622, %v1615, %v1537
        %v1626 = vsel %vm1622, %v1617, %v1539
        %v1628 = vsel %vm1622, %v1619, %v1541
        %v1630 = vsel %vm1622, %v1621, %v1543
        %v1632 = vsel %vm475, %v1624, %v1557
        %v1634 = vsel %vm475, %v1626, %v1559
        %v1636 = vsel %vm475, %v1628, %v1561
        %v1638 = vsel %vm475, %v1630, %v1563
        %v1639 = vld [vmem:[%s4] sm:$0xf]
        %v1640 = vld [vmem:[%s4 + $0x4] sm:$0xf]
        %v1641 = vld [vmem:[%s4 + $0x8] sm:$0x1]
        %v1642 = vld [vmem:[%s5] sm:$0x1]
        %v1644 = vlaneseq
        %v1645 = vshrl.u32 %v1644, 7
        %v1646 = vsub.s32 0, %v1645
        %v1647 = vrot.slane %v1642, %v1646
        %v1652 = vunpack.c.l.b16 %v1639
        %v1653 = vunpack.c.l.b16 %v1640
        %v1654 = vunpack.c.l.b16 %v1641
        %v1655 = vpack.c.b16 %v1653, %v1652
        %v1656 = vpack.c.b16 %v1654, %v1654
        %vm1658 = vcmask 146432
        %v1659 = vsel %vm1658, %v1632, 0
        %v1661 = vsel %vm1658, %v1634, 0
        %v1663 = vsel %vm1658, %v1636, 0
        %v1665 = vsel %vm1658, %v1638, 0
        %vm1667 = vcmask 1040384
        %v1669 = vsel %vm1667, %v1656, 0
        %1671 = vmatprep.subr.bf16.mxu0 0
        %1672 = vmatpush1.bf16.msra.mxu0 %v1655
        %1673 = vmatprep.subr.bf16.mxu0 0
        %1674 = vmatpush1.bf16.msra.mxu0 %v1669
        %1675 = vmatprep.subr.bf16.mxu0 0
        %1676 = vmatpush1.bf16.msra.mxu0 0
        %1677 = vmatprep.subr.bf16.mxu0 0
        %1678 = vmatpush1.bf16.msra.mxu0 0
        %1679 = vmatprep.subr.bf16.mxu0 0
        %1680 = vmatpush1.bf16.msra.mxu0 0
        %1681 = vmatprep.subr.bf16.mxu0 0
        %1682 = vmatpush1.bf16.msra.mxu0 0
        %1683 = vmatprep.subr.bf16.mxu0 0
        %1684 = vmatpush1.bf16.msra.mxu0 0
        %1685 = vmatprep.subr.bf16.mxu0 0
        %1686 = vmatpush1.bf16.msra.mxu0 0
        %1687 = vmatprep.subr.bf16.mxu0 0
        %1688 = vmatpush1.bf16.msra.mxu0 0
        %1689 = vmatprep.subr.bf16.mxu0 0
        %1690 = vmatpush1.bf16.msra.mxu0 0
        %1691 = vmatprep.subr.bf16.mxu0 0
        %1692 = vmatpush1.bf16.msra.mxu0 0
        %1693 = vmatprep.subr.bf16.mxu0 0
        %1694 = vmatpush1.bf16.msra.mxu0 0
        %1695 = vmatprep.subr.bf16.mxu0 0
        %1696 = vmatpush1.bf16.msra.mxu0 0
        %1697 = vmatprep.subr.bf16.mxu0 0
        %1698 = vmatpush1.bf16.msra.mxu0 0
        %1699 = vmatprep.subr.bf16.mxu0 0
        %1700 = vmatpush1.bf16.msra.mxu0 0
        %1701 = vmatprep.subr.bf16.mxu0 0
        %1702 = vmatpush1.bf16.msra.mxu0 0
        %1703 = vmatprep.mubr.bf16.mxu0 0
        %1704 = vmatmul.mubr.bf16.gmra.mrb[0].mxu0 %v1659
        %v1705 = vpop.f32.mrb[0].mxu0
        %v1706 = vadd.f32 %v1647, %v1705
        %v1707 = vpop.f32.mrb[0].mxu0
        %v1708 = vpop.f32.mrb[0].mxu0
        %v1709 = vadd.f32 %v1647, %v1708
        %v1710 = vpop.f32.mrb[0].mxu0
        %1711 = vmatprep.mubr.bf16.mxu0 0
        %1712 = vmatmul.mubr.bf16.gmra.mrb[0].mxu0 %v1661
        %v1713 = vpop.f32.mrb[0].mxu0
        %v1714 = vadd.f32 %v1647, %v1713
        %v1715 = vpop.f32.mrb[0].mxu0
        %v1716 = vpop.f32.mrb[0].mxu0
        %v1717 = vadd.f32 %v1647, %v1716
        %v1718 = vpop.f32.mrb[0].mxu0
        %1719 = vmatprep.mubr.bf16.mxu0 0
        %1720 = vmatmul.mubr.bf16.gmra.mrb[0].mxu0 %v1663
        %v1721 = vpop.f32.mrb[0].mxu0
        %v1722 = vadd.f32 %v1647, %v1721
        %v1723 = vpop.f32.mrb[0].mxu0
        %v1724 = vpop.f32.mrb[0].mxu0
        %v1725 = vadd.f32 %v1647, %v1724
        %v1726 = vpop.f32.mrb[0].mxu0
        %1727 = vmatprep.mubr.bf16.mxu0 0
        %1728 = vmatmul.mubr.bf16.gmra.mrb[0].mxu0 %v1665
        %v1729 = vpop.f32.mrb[0].mxu0
        %v1730 = vadd.f32 %v1647, %v1729
        %v1731 = vpop.f32.mrb[0].mxu0
        %v1732 = vpop.f32.mrb[0].mxu0
        %v1733 = vadd.f32 %v1647, %v1732
        %v1734 = vpop.f32.mrb[0].mxu0
        %1735 = vdwg.mxu0
        %vm1736 = vcmp.ge.f32.partialorder %v1706, 0.0
        %vm1737 = vcmp.ge.f32.partialorder %v1709, 0.0
        %vm1738 = vcmp.ge.f32.partialorder %v1714, 0.0
        %vm1739 = vcmp.ge.f32.partialorder %v1717, 0.0
        %vm1740 = vcmp.ge.f32.partialorder %v1722, 0.0
        %vm1741 = vcmp.ge.f32.partialorder %v1725, 0.0
        %vm1742 = vcmp.ge.f32.partialorder %v1730, 0.0
        %vm1743 = vcmp.ge.f32.partialorder %v1733, 0.0
        %v1744 = vld [vmem:[%s6] sm:$0x1]
        %v1746 = vlaneseq
        %v1747 = vshrl.u32 %v1746, 7
        %v1748 = vsub.s32 0, %v1747
        %v1749 = vrot.slane %v1744, %v1748
        %v1751 = vmul.f32 %v1749, %v1706
        %v1752 = vmul.f32 %v1749, %v1709
        %v1753 = vmul.f32 %v1749, %v1714
        %v1754 = vmul.f32 %v1749, %v1717
        %v1755 = vmul.f32 %v1749, %v1722
        %v1756 = vmul.f32 %v1749, %v1725
        %v1757 = vmul.f32 %v1749, %v1730
        %v1758 = vmul.f32 %v1749, %v1733
        %v1759 = vsel %vm1736, %v1706, %v1751
        %v1760 = vsel %vm1737, %v1709, %v1752
        %v1761 = vsel %vm1738, %v1714, %v1753
        %v1762 = vsel %vm1739, %v1717, %v1754
        %v1763 = vsel %vm1740, %v1722, %v1755
        %v1764 = vsel %vm1741, %v1725, %v1756
        %v1765 = vsel %vm1742, %v1730, %v1757
        %v1766 = vsel %vm1743, %v1733, %v1758
        %v1767 = vpack.c.bf16 %v1760, %v1759
        %v1768 = vpack.c.bf16 %v1762, %v1761
        %v1769 = vpack.c.bf16 %v1764, %v1763
        %v1770 = vpack.c.bf16 %v1766, %v1765
        %v1771 = vld [vmem:[%s7] sm:$0x1]
        %v1772 = vld [vmem:[%s8] sm:$0x1]
        %v1774 = vlaneseq
        %v1775 = vshrl.u32 %v1774, 7
        %v1776 = vsub.s32 0, %v1775
        %v1777 = vrot.slane %v1772, %v1776
        %v1780 = vsel %vm1564, %v1767, 0
        %v1783 = vsel %vm1564, %v1768, 0
        %v1786 = vsel %vm1564, %v1769, 0
        %v1789 = vsel %vm1564, %v1770, 0
        %v1792 = vsel %vm1667, %v1771, 0
        %1794 = vmatprep.subr.bf16.mxu0 0
        %1795 = vmatpush1.bf16.msra.mxu0 %v1792
        %1796 = vmatprep.subr.bf16.mxu0 0
        %1797 = vmatpush1.bf16.msra.mxu0 0
        %1798 = vmatprep.subr.bf16.mxu0 0
        %1799 = vmatpush1.bf16.msra.mxu0 0
        %1800 = vmatprep.subr.bf16.mxu0 0
        %1801 = vmatpush1.bf16.msra.mxu0 0
        %1802 = vmatprep.subr.bf16.mxu0 0
        %1803 = vmatpush1.bf16.msra.mxu0 0
        %1804 = vmatprep.subr.bf16.mxu0 0
        %1805 = vmatpush1.bf16.msra.mxu0 0
        %1806 = vmatprep.subr.bf16.mxu0 0
        %1807 = vmatpush1.bf16.msra.mxu0 0
        %1808 = vmatprep.subr.bf16.mxu0 0
        %1809 = vmatpush1.bf16.msra.mxu0 0
        %1810 = vmatprep.subr.bf16.mxu0 0
        %1811 = vmatpush1.bf16.msra.mxu0 0
        %1812 = vmatprep.subr.bf16.mxu0 0
        %1813 = vmatpush1.bf16.msra.mxu0 0
        %1814 = vmatprep.subr.bf16.mxu0 0
        %1815 = vmatpush1.bf16.msra.mxu0 0
        %1816 = vmatprep.subr.bf16.mxu0 0
        %1817 = vmatpush1.bf16.msra.mxu0 0
        %1818 = vmatprep.subr.bf16.mxu0 0
        %1819 = vmatpush1.bf16.msra.mxu0 0
        %1820 = vmatprep.subr.bf16.mxu0 0
        %1821 = vmatpush1.bf16.msra.mxu0 0
        %1822 = vmatprep.subr.bf16.mxu0 0
        %1823 = vmatpush1.bf16.msra.mxu0 0
        %1824 = vmatprep.subr.bf16.mxu0 0
        %1825 = vmatpush1.bf16.msra.mxu0 0
        %1826 = vmatprep.mubr.bf16.mxu0 0
        %1827 = vmatmul.mubr.bf16.gmra.mrb[0].mxu0 %v1780
        %v1828 = vpop.f32.mrb[0].mxu0
        %v1829 = vadd.f32 %v1777, %v1828
        %v1830 = vpop.f32.mrb[0].mxu0
        %v1831 = vpop.f32.mrb[0].mxu0
        %v1832 = vadd.f32 %v1777, %v1831
        %v1833 = vpop.f32.mrb[0].mxu0
        %1834 = vmatprep.mubr.bf16.mxu0 0
        %1835 = vmatmul.mubr.bf16.gmra.mrb[0].mxu0 %v1783
        %v1836 = vpop.f32.mrb[0].mxu0
        %v1837 = vadd.f32 %v1777, %v1836
        %v1838 = vpop.f32.mrb[0].mxu0
        %v1839 = vpop.f32.mrb[0].mxu0
        %v1840 = vadd.f32 %v1777, %v1839
        %v1841 = vpop.f32.mrb[0].mxu0
        %1842 = vmatprep.mubr.bf16.mxu0 0
        %1843 = vmatmul.mubr.bf16.gmra.mrb[0].mxu0 %v1786
        %v1844 = vpop.f32.mrb[0].mxu0
        %v1845 = vadd.f32 %v1777, %v1844
        %v1846 = vpop.f32.mrb[0].mxu0
        %v1847 = vpop.f32.mrb[0].mxu0
        %v1848 = vadd.f32 %v1777, %v1847
        %v1849 = vpop.f32.mrb[0].mxu0
        %1850 = vmatprep.mubr.bf16.mxu0 0
        %1851 = vmatmul.mubr.bf16.gmra.mrb[0].mxu0 %v1789
        %v1852 = vpop.f32.mrb[0].mxu0
        %v1853 = vadd.f32 %v1777, %v1852
        %v1854 = vpop.f32.mrb[0].mxu0
        %v1855 = vpop.f32.mrb[0].mxu0
        %v1856 = vadd.f32 %v1777, %v1855
        %v1857 = vpop.f32.mrb[0].mxu0
        %1858 = vdwg.mxu0
        %vm1859 = vcmp.ge.f32.partialorder %v1829, 0.0
        %vm1860 = vcmp.ge.f32.partialorder %v1832, 0.0
        %vm1861 = vcmp.ge.f32.partialorder %v1837, 0.0
        %vm1862 = vcmp.ge.f32.partialorder %v1840, 0.0
        %vm1863 = vcmp.ge.f32.partialorder %v1845, 0.0
        %vm1864 = vcmp.ge.f32.partialorder %v1848, 0.0
        %vm1865 = vcmp.ge.f32.partialorder %v1853, 0.0
        %vm1866 = vcmp.ge.f32.partialorder %v1856, 0.0
        %v1867 = vld [vmem:[%s9] sm:$0x1]
        %v1869 = vlaneseq
        %v1870 = vshrl.u32 %v1869, 7
        %v1871 = vsub.s32 0, %v1870
        %v1872 = vrot.slane %v1867, %v1871
        %v1874 = vmul.f32 %v1872, %v1829
        %v1875 = vmul.f32 %v1872, %v1832
        %v1876 = vmul.f32 %v1872, %v1837
        %v1877 = vmul.f32 %v1872, %v1840
        %v1878 = vmul.f32 %v1872, %v1845
        %v1879 = vmul.f32 %v1872, %v1848
        %v1880 = vmul.f32 %v1872, %v1853
        %v1881 = vmul.f32 %v1872, %v1856
        %v1882 = vsel %vm1859, %v1829, %v1874
        %v1883 = vsel %vm1860, %v1832, %v1875
        %v1884 = vsel %vm1861, %v1837, %v1876
        %v1885 = vsel %vm1862, %v1840, %v1877
        %v1886 = vsel %vm1863, %v1845, %v1878
        %v1887 = vsel %vm1864, %v1848, %v1879
        %v1888 = vsel %vm1865, %v1853, %v1880
        %v1889 = vsel %vm1866, %v1856, %v1881
        %v1890 = vlaneseq
        %v1891 = vshrl.u32 %v1890, 7
        %v1892 = vmul.u32 %v1891, 2
        %v1893 = vadd.s32 %v1892, 32
        %v1894 = vadd.s32 %v1892, 64
        %v1895 = vadd.s32 %v1892, 96
        %v1896 = vadd.s32 %v1892, 128
        %v1897 = vadd.s32 %v1892, 160
        %v1898 = vadd.s32 %v1892, 192
        %v1899 = vadd.s32 %v1892, 224
        %1908 = vrot.lane.b32.xlu0 %v426, 8
        %v1909 = vpop.permute.xlu0 %1908
        %1910 = vrot.lane.b32.xlu0 %v427, 8
        %v1911 = vpop.permute.xlu0 %1910
        %1912 = vrot.lane.b32.xlu0 %v428, 8
        %v1913 = vpop.permute.xlu0 %1912
        %1914 = vrot.lane.b32.xlu0 %v429, 8
        %v1915 = vpop.permute.xlu0 %1914
        %1916 = vrot.lane.b32.xlu0 %v430, 8
        %v1917 = vpop.permute.xlu0 %1916
        %1918 = vrot.lane.b32.xlu0 %v431, 8
        %v1919 = vpop.permute.xlu0 %1918
        %1920 = vrot.lane.b32.xlu0 %v432, 8
        %v1921 = vpop.permute.xlu0 %1920
        %1922 = vrot.lane.b32.xlu0 %v433, 8
        %v1923 = vpop.permute.xlu0 %1922
        %vm1932 = vcmp.gt.f32.partialorder %v426, %v1909
        %vm1933 = vcmp.gt.f32.partialorder %v427, %v1911
        %vm1934 = vcmp.gt.f32.partialorder %v428, %v1913
        %vm1935 = vcmp.gt.f32.partialorder %v429, %v1915
        %vm1936 = vcmp.gt.f32.partialorder %v430, %v1917
        %vm1937 = vcmp.gt.f32.partialorder %v431, %v1919
        %vm1938 = vcmp.gt.f32.partialorder %v432, %v1921
        %vm1939 = vcmp.gt.f32.partialorder %v433, %v1923
        %v1940 = vadd.s32 %v1892, 1
        %v1941 = vadd.s32 %v1893, 1
        %v1942 = vadd.s32 %v1894, 1
        %v1943 = vadd.s32 %v1895, 1
        %v1944 = vadd.s32 %v1896, 1
        %v1945 = vadd.s32 %v1897, 1
        %v1946 = vadd.s32 %v1898, 1
        %v1947 = vadd.s32 %v1899, 1
        %v1948 = vsel %vm1932, %v1940, %v1892
        %v1949 = vsel %vm1933, %v1941, %v1893
        %v1950 = vsel %vm1934, %v1942, %v1894
        %v1951 = vsel %vm1935, %v1943, %v1895
        %v1952 = vsel %vm1936, %v1944, %v1896
        %v1953 = vsel %vm1937, %v1945, %v1897
        %v1954 = vsel %vm1938, %v1946, %v1898
        %v1955 = vsel %vm1939, %v1947, %v1899
        %v1956 = vsel %vm1932, %v426, %v1909
        %v1957 = vsel %vm1933, %v427, %v1911
        %v1958 = vsel %vm1934, %v428, %v1913
        %v1959 = vsel %vm1935, %v429, %v1915
        %v1960 = vsel %vm1936, %v430, %v1917
        %v1961 = vsel %vm1937, %v431, %v1919
        %v1962 = vsel %vm1938, %v432, %v1921
        %v1963 = vsel %vm1939, %v433, %v1923
        %1972 = vrot.lane.b32.xlu0 %v1956, 120
        %v1973 = vpop.permute.xlu0 %1972
        %1974 = vrot.lane.b32.xlu0 %v1957, 120
        %v1975 = vpop.permute.xlu0 %1974
        %1976 = vrot.lane.b32.xlu0 %v1958, 120
        %v1977 = vpop.permute.xlu0 %1976
        %1978 = vrot.lane.b32.xlu0 %v1959, 120
        %v1979 = vpop.permute.xlu0 %1978
        %1980 = vrot.lane.b32.xlu0 %v1960, 120
        %v1981 = vpop.permute.xlu0 %1980
        %1982 = vrot.lane.b32.xlu0 %v1961, 120
        %v1983 = vpop.permute.xlu0 %1982
        %1984 = vrot.lane.b32.xlu0 %v1962, 120
        %v1985 = vpop.permute.xlu0 %1984
        %1986 = vrot.lane.b32.xlu0 %v1963, 120
        %v1987 = vpop.permute.xlu0 %1986
        %vm1996 = vcmp.gt.f32.partialorder %v435, %v1973
        %vm1997 = vcmp.gt.f32.partialorder %v436, %v1975
        %vm1998 = vcmp.gt.f32.partialorder %v437, %v1977
        %vm1999 = vcmp.gt.f32.partialorder %v438, %v1979
        %vm2000 = vcmp.gt.f32.partialorder %v439, %v1981
        %vm2001 = vcmp.gt.f32.partialorder %v440, %v1983
        %vm2002 = vcmp.gt.f32.partialorder %v441, %v1985
        %vm2003 = vcmp.gt.f32.partialorder %v442, %v1987
        %v2004 = vadd.s32 %v1892, 16
        %v2005 = vadd.s32 %v1893, 16
        %v2006 = vadd.s32 %v1894, 16
        %v2007 = vadd.s32 %v1895, 16
        %v2008 = vadd.s32 %v1896, 16
        %v2009 = vadd.s32 %v1897, 16
        %v2010 = vadd.s32 %v1898, 16
        %v2011 = vadd.s32 %v1899, 16
        %2012 = vrot.lane.b32.xlu0 %v1948, 120
        %v2013 = vpop.permute.xlu0 %2012
        %2014 = vrot.lane.b32.xlu0 %v1949, 120
        %v2015 = vpop.permute.xlu0 %2014
        %2016 = vrot.lane.b32.xlu0 %v1950, 120
        %v2017 = vpop.permute.xlu0 %2016
        %2018 = vrot.lane.b32.xlu0 %v1951, 120
        %v2019 = vpop.permute.xlu0 %2018
        %2020 = vrot.lane.b32.xlu0 %v1952, 120
        %v2021 = vpop.permute.xlu0 %2020
        %2022 = vrot.lane.b32.xlu0 %v1953, 120
        %v2023 = vpop.permute.xlu0 %2022
        %2024 = vrot.lane.b32.xlu0 %v1954, 120
        %v2025 = vpop.permute.xlu0 %2024
        %2026 = vrot.lane.b32.xlu0 %v1955, 120
        %v2027 = vpop.permute.xlu0 %2026
        %v2028 = vsel %vm1996, %v2004, %v2013
        %v2029 = vsel %vm1997, %v2005, %v2015
        %v2030 = vsel %vm1998, %v2006, %v2017
        %v2031 = vsel %vm1999, %v2007, %v2019
        %v2032 = vsel %vm2000, %v2008, %v2021
        %v2033 = vsel %vm2001, %v2009, %v2023
        %v2034 = vsel %vm2002, %v2010, %v2025
        %v2035 = vsel %vm2003, %v2011, %v2027
        %v2036 = vsel %vm1996, %v435, %v1973
        %v2037 = vsel %vm1997, %v436, %v1975
        %v2038 = vsel %vm1998, %v437, %v1977
        %v2039 = vsel %vm1999, %v438, %v1979
        %v2040 = vsel %vm2000, %v439, %v1981
        %v2041 = vsel %vm2001, %v440, %v1983
        %v2042 = vsel %vm2002, %v441, %v1985
        %v2043 = vsel %vm2003, %v442, %v1987
        %2052 = vrot.lane.b32.xlu0 %v2036, 8
        %v2053 = vpop.permute.xlu0 %2052
        %2054 = vrot.lane.b32.xlu0 %v2037, 8
        %v2055 = vpop.permute.xlu0 %2054
        %2056 = vrot.lane.b32.xlu0 %v2038, 8
        %v2057 = vpop.permute.xlu0 %2056
        %2058 = vrot.lane.b32.xlu0 %v2039, 8
        %v2059 = vpop.permute.xlu0 %2058
        %2060 = vrot.lane.b32.xlu0 %v2040, 8
        %v2061 = vpop.permute.xlu0 %2060
        %2062 = vrot.lane.b32.xlu0 %v2041, 8
        %v2063 = vpop.permute.xlu0 %2062
        %2064 = vrot.lane.b32.xlu0 %v2042, 8
        %v2065 = vpop.permute.xlu0 %2064
        %2066 = vrot.lane.b32.xlu0 %v2043, 8
        %v2067 = vpop.permute.xlu0 %2066
        %vm2076 = vcmp.gt.f32.partialorder %v435, %v2053
        %vm2077 = vcmp.gt.f32.partialorder %v436, %v2055
        %vm2078 = vcmp.gt.f32.partialorder %v437, %v2057
        %vm2079 = vcmp.gt.f32.partialorder %v438, %v2059
        %vm2080 = vcmp.gt.f32.partialorder %v439, %v2061
        %vm2081 = vcmp.gt.f32.partialorder %v440, %v2063
        %vm2082 = vcmp.gt.f32.partialorder %v441, %v2065
        %vm2083 = vcmp.gt.f32.partialorder %v442, %v2067
        %v2084 = vadd.s32 %v1892, 17
        %v2085 = vadd.s32 %v1893, 17
        %v2086 = vadd.s32 %v1894, 17
        %v2087 = vadd.s32 %v1895, 17
        %v2088 = vadd.s32 %v1896, 17
        %v2089 = vadd.s32 %v1897, 17
        %v2090 = vadd.s32 %v1898, 17
        %v2091 = vadd.s32 %v1899, 17
        %2092 = vrot.lane.b32.xlu0 %v2028, 8
        %v2093 = vpop.permute.xlu0 %2092
        %2094 = vrot.lane.b32.xlu0 %v2029, 8
        %v2095 = vpop.permute.xlu0 %2094
        %2096 = vrot.lane.b32.xlu0 %v2030, 8
        %v2097 = vpop.permute.xlu0 %2096
        %2098 = vrot.lane.b32.xlu0 %v2031, 8
        %v2099 = vpop.permute.xlu0 %2098
        %2100 = vrot.lane.b32.xlu0 %v2032, 8
        %v2101 = vpop.permute.xlu0 %2100
        %2102 = vrot.lane.b32.xlu0 %v2033, 8
        %v2103 = vpop.permute.xlu0 %2102
        %2104 = vrot.lane.b32.xlu0 %v2034, 8
        %v2105 = vpop.permute.xlu0 %2104
        %2106 = vrot.lane.b32.xlu0 %v2035, 8
        %v2107 = vpop.permute.xlu0 %2106
        %v2108 = vsel %vm2076, %v2084, %v2093
        %v2109 = vsel %vm2077, %v2085, %v2095
        %v2110 = vsel %vm2078, %v2086, %v2097
        %v2111 = vsel %vm2079, %v2087, %v2099
        %v2112 = vsel %vm2080, %v2088, %v2101
        %v2113 = vsel %vm2081, %v2089, %v2103
        %v2114 = vsel %vm2082, %v2090, %v2105
        %v2115 = vsel %vm2083, %v2091, %v2107
        %v2116 = vsel %vm2076, %v435, %v2053
        %v2117 = vsel %vm2077, %v436, %v2055
        %v2118 = vsel %vm2078, %v437, %v2057
        %v2119 = vsel %vm2079, %v438, %v2059
        %v2120 = vsel %vm2080, %v439, %v2061
        %v2121 = vsel %vm2081, %v440, %v2063
        %v2122 = vsel %vm2082, %v441, %v2065
        %v2123 = vsel %vm2083, %v442, %v2067
        %2124 = vrot.lane.b32.xlu0 %v2108, 120
        %v2125 = vpop.permute.xlu0 %2124
        %2126 = vrot.lane.b32.xlu0 %v2109, 120
        %v2127 = vpop.permute.xlu0 %2126
        %2128 = vrot.lane.b32.xlu0 %v2110, 120
        %v2129 = vpop.permute.xlu0 %2128
        %2130 = vrot.lane.b32.xlu0 %v2111, 120
        %v2131 = vpop.permute.xlu0 %2130
        %2132 = vrot.lane.b32.xlu0 %v2112, 120
        %v2133 = vpop.permute.xlu0 %2132
        %2134 = vrot.lane.b32.xlu0 %v2113, 120
        %v2135 = vpop.permute.xlu0 %2134
        %2136 = vrot.lane.b32.xlu0 %v2114, 120
        %v2137 = vpop.permute.xlu0 %2136
        %2138 = vrot.lane.b32.xlu0 %v2115, 120
        %v2139 = vpop.permute.xlu0 %2138
        %2140 = vst.msk [vmem:[%s424] sm:$0xff] %vm1595, %v2125
        %2141 = vst.msk [vmem:[%s424 + $0x8] sm:$0xff] %vm1595, %v2127
        %2142 = vst.msk [vmem:[%s424 + $0x10] sm:$0xff] %vm1595, %v2129
        %2143 = vst.msk [vmem:[%s424 + $0x18] sm:$0xff] %vm1595, %v2131
        %2144 = vst.msk [vmem:[%s424 + $0x20] sm:$0xff] %vm1595, %v2133
        %2145 = vst.msk [vmem:[%s424 + $0x28] sm:$0xff] %vm1595, %v2135
        %2146 = vst.msk [vmem:[%s424 + $0x30] sm:$0xff] %vm1595, %v2137
        %2147 = vst.msk [vmem:[%s424 + $0x38] sm:$0xff] %vm1595, %v2139
        %2156 = vrot.lane.b32.xlu0 %v2116, 120
        %v2157 = vpop.permute.xlu0 %2156
        %2158 = vrot.lane.b32.xlu0 %v2117, 120
        %v2159 = vpop.permute.xlu0 %2158
        %2160 = vrot.lane.b32.xlu0 %v2118, 120
        %v2161 = vpop.permute.xlu0 %2160
        %2162 = vrot.lane.b32.xlu0 %v2119, 120
        %v2163 = vpop.permute.xlu0 %2162
        %2164 = vrot.lane.b32.xlu0 %v2120, 120
        %v2165 = vpop.permute.xlu0 %2164
        %2166 = vrot.lane.b32.xlu0 %v2121, 120
        %v2167 = vpop.permute.xlu0 %2166
        %2168 = vrot.lane.b32.xlu0 %v2122, 120
        %v2169 = vpop.permute.xlu0 %2168
        %2170 = vrot.lane.b32.xlu0 %v2123, 120
        %v2171 = vpop.permute.xlu0 %2170
        %v2180 = vsel %vm1595, %v2157, 0.0
        %v2181 = vsel %vm1595, %v2159, 0.0
        %v2182 = vsel %vm1595, %v2161, 0.0
        %v2183 = vsel %vm1595, %v2163, 0.0
        %v2184 = vsel %vm1595, %v2165, 0.0
        %v2185 = vsel %vm1595, %v2167, 0.0
        %v2186 = vsel %vm1595, %v2169, 0.0
        %v2187 = vsel %vm1595, %v2171, 0.0
        %v2188 = vadd.f32 %v1882, %v2180
        %v2189 = vadd.f32 %v1883, %v2181
        %v2190 = vadd.f32 %v1884, %v2182
        %v2191 = vadd.f32 %v1885, %v2183
        %v2192 = vadd.f32 %v1886, %v2184
        %v2193 = vadd.f32 %v1887, %v2185
        %v2194 = vadd.f32 %v1888, %v2186
        %v2195 = vadd.f32 %v1889, %v2187
        %v2196 = vld [vmem:[%s10] sm:$0x1]
        %vm2197 = vcmp.ge.f32.partialorder %v2188, 0.0
        %vm2198 = vcmp.ge.f32.partialorder %v2189, 0.0
        %vm2199 = vcmp.ge.f32.partialorder %v2190, 0.0
        %vm2200 = vcmp.ge.f32.partialorder %v2191, 0.0
        %vm2201 = vcmp.ge.f32.partialorder %v2192, 0.0
        %vm2202 = vcmp.ge.f32.partialorder %v2193, 0.0
        %vm2203 = vcmp.ge.f32.partialorder %v2194, 0.0
        %vm2204 = vcmp.ge.f32.partialorder %v2195, 0.0
        %v2206 = vlaneseq
        %v2207 = vshrl.u32 %v2206, 7
        %v2208 = vsub.s32 0, %v2207
        %v2209 = vrot.slane %v2196, %v2208
        %v2211 = vmul.f32 %v2209, %v2188
        %v2212 = vmul.f32 %v2209, %v2189
        %v2213 = vmul.f32 %v2209, %v2190
        %v2214 = vmul.f32 %v2209, %v2191
        %v2215 = vmul.f32 %v2209, %v2192
        %v2216 = vmul.f32 %v2209, %v2193
        %v2217 = vmul.f32 %v2209, %v2194
        %v2218 = vmul.f32 %v2209, %v2195
        %v2219 = vsel %vm2197, %v2188, %v2211
        %v2220 = vsel %vm2198, %v2189, %v2212
        %v2221 = vsel %vm2199, %v2190, %v2213
        %v2222 = vsel %vm2200, %v2191, %v2214
        %v2223 = vsel %vm2201, %v2192, %v2215
        %v2224 = vsel %vm2202, %v2193, %v2216
        %v2225 = vsel %vm2203, %v2194, %v2217
        %v2226 = vsel %vm2204, %v2195, %v2218
        %2227 = vst.msk [vmem:[%s407] sm:$0xff] %vm475, %v2219
        %2228 = vst.msk [vmem:[%s407 + $0x8] sm:$0xff] %vm475, %v2220
        %2229 = vst.msk [vmem:[%s407 + $0x10] sm:$0xff] %vm475, %v2221
        %2230 = vst.msk [vmem:[%s407 + $0x18] sm:$0xff] %vm475, %v2222
        %2231 = vst.msk [vmem:[%s407 + $0x20] sm:$0xff] %vm475, %v2223
        %2232 = vst.msk [vmem:[%s407 + $0x28] sm:$0xff] %vm475, %v2224
        %2233 = vst.msk [vmem:[%s407 + $0x30] sm:$0xff] %vm475, %v2225
        %2234 = vst.msk [vmem:[%s407 + $0x38] sm:$0xff] %vm475, %v2226
        %s2235 = sand.u32 %s271, 1
        %s2236 = scalar_lea.sflag [#allocation4], %s2235
        %s2237 = sand.u32 %s271, 1
        %s2238 = smul.addr %s2237, 64
        %s2239 = scalar_lea.vmem [#allocation3], %s2238
        %p2240 = scmp.lt.s32.totalorder %s27, 1
        %s2241 = scalar_select %p2240, %s27, 1
        %s2242 = smul.addr %s2241, 8
        %s2243 = smul.addr %s2242, 8
        %s2244 = scalar_lea.vmem %s12, %s2243
        // Predicated region
        $region65: #{downsampling_bottleneck_forward.1} parent=63 // pred_check
          %p2245 = pneg %p281
        $region66: #{downsampling_bottleneck_forward.1} parent=63 // pred_check_branch
          %2247 = sbr.rel (%p2245) target = $region68
        $region67: #{downsampling_bottleneck_forward.1} parent=63 // pred_region
          %s2249 = ssub.s32 1024, 1024
          %2250 = vsyncadd %s2236, %s2249
          %s2251 = smul.addr %s27, 8
          %s2252 = smul.addr %s2251, 128
          %s2253 = scalar_lea.hbm %s11, %s2252
          %s2254 = sshll.u32 %s2239, 4
          %s2255 = int_to_ptr.vmem [resolvable:$true] %s2254
          %2260 = dma.vmem_to_hbm [thread:$0]  %s2255, 1024, %s2253, %s2236, 128, 128, 8
        $region68: #{downsampling_bottleneck_forward.1} parent=63 // pred_fallthru
          _
        // Predicated region
        $region69: #{downsampling_bottleneck_forward.1} parent=63 // pred_check
          %p2261 = pneg %p307
        $region70: #{downsampling_bottleneck_forward.1} parent=63 // pred_check_branch
          %2263 = sbr.rel (%p2261) target = $region72
        $region71: #{downsampling_bottleneck_forward.1} parent=63 // pred_region
          _
        $region72: #{downsampling_bottleneck_forward.1} parent=63 // pred_fallthru
          _
      $region64: #{downsampling_bottleneck_forward.1} parent=5 // pred_fallthru
        _
      %p2264 = scmp.le.s32.totalorder 2, %s22
      // Predicated region
      $region73: #{downsampling_bottleneck_forward.1} parent=5 // pred_check
        %p2265 = pneg %p2264
      $region74: #{downsampling_bottleneck_forward.1} parent=5 // pred_check_branch
        %2267 = sbr.rel (%p2265) target = $region76
      $region75: #{downsampling_bottleneck_forward.1} parent=5 // pred_region
        %s2268 = ssub.s32 %s22, 2
        // Predicated region
        $region77: #{downsampling_bottleneck_forward.1} parent=75 // pred_check
          %p2269 = pneg %p287
        $region78: #{downsampling_bottleneck_forward.1} parent=75 // pred_check_branch
          %2271 = sbr.rel (%p2269) target = $region80
        $region79: #{downsampling_bottleneck_forward.1} parent=75 // pred_region
          %s2272 = sand.u32 %s272, 1
          %s2273 = scalar_lea.sflag [#allocation4], %s2272
          %s2274 = sand.u32 %s272, 1
          %s2275 = smul.addr %s2274, 64
          %s2276 = scalar_lea.vmem [#allocation3], %s2275
          %2277 = dma.done %s2273, 1024
        $region80: #{downsampling_bottleneck_forward.1} parent=75 // pred_fallthru
          _
        // Predicated region
        $region81: #{downsampling_bottleneck_forward.1} parent=75 // pred_check
          %p2278 = pneg %p313
        $region82: #{downsampling_bottleneck_forward.1} parent=75 // pred_check_branch
          %2280 = sbr.rel (%p2278) target = $region84
        $region83: #{downsampling_bottleneck_forward.1} parent=75 // pred_region
          %p2281 = scmp.lt.s32.totalorder %s28, 1
          %s2282 = scalar_select %p2281, %s28, 1
          %s2283 = smul.addr %s2282, 8
          %s2284 = smul.addr %s2283, 8
          %s2285 = scalar_lea.vmem %s12, %s2284
        $region84: #{downsampling_bottleneck_forward.1} parent=75 // pred_fallthru
          _
      $region76: #{downsampling_bottleneck_forward.1} parent=5 // pred_fallthru
        _
    $region6: #{downsampling_bottleneck_forward.1} parent=1 // loop_footer
      %s26 = sadd.s32 1, %s22
    $region7: #{downsampling_bottleneck_forward.1} parent=1 // loop_footer_branch
      %21 = sbr.rel target = $region3
    $region8: #{downsampling_bottleneck_forward.1} parent=1 // loop_exit
      _
    %2286 = vsyncpa [#allocation4], 1
    %s2287 = scalar_lea.sflag [#allocation4], 1
    %2288 = vsyncpa %s2287, 1

</llo_original>
